<compile_context>
chip_gen: v5e
topology: v5e:2x2
jax: 0.10.0
libtpu: 0.0.40
codegen_flags: <defaults>
</compile_context>

<pallas_src>
import jax
import jax.numpy as jnp
from jax.experimental import pallas as pl
from jax.experimental.pallas import tpu as pltpu


def _pick_tile(total, cap, min_steps=1):
    """Largest divisor of `total` that is <= cap and leaves >= min_steps tiles."""
    cap = max(1, min(int(cap), total))
    best = 1
    for d in range(1, cap + 1):
        if total % d == 0 and (total // d) >= min_steps:
            best = d
    return best


# ---------------------------------------------------------------------------
# Fused kernel.
#   xt/xb/xbo : (1,1,W,C_in) / (1,TH,W,C_in) / (1,1,W,C_in)  top-halo / body / bottom-halo
#   w1_ref    : (2r, C_in, r*C_out)   1x1 weights, [branch*r + i], channel order (j, c)
#   b1_ref    : (2r, 1, r*C_out)
#   wc_ref    : (3, 3, r*C_out, r*C_out)  expanded conv3x3 weights per (dh, dq) tap
#   bc_ref    : (1, r*C_out)
#   o_ref     : (1, TH, r, W, r*C_out)    output through the pre-shuffle view
#   a_ref     : VMEM (r, TH+2, W, r*C_out) scratch: conv-input planes per sub-row i
# ---------------------------------------------------------------------------
def _fused_res_up_kernel(xt_ref, xb_ref, xbo_ref, w1_ref, b1_ref, wc_ref, bc_ref,
                         o_ref, a_ref):
    t = pl.program_id(1)
    n_t = pl.num_programs(1)
    _, TH, W, C_in = xb_ref.shape
    r = o_ref.shape[2]
    rC = o_ref.shape[4]
    f32 = jnp.float32

    def leaky(v, slope):
        return jnp.where(v >= 0.0, v, slope * v)

    # ---- subpel 1x1 conv (branch 0) -> per-sub-row conv-input planes ----------
    x2d = xb_ref[0].reshape(TH * W, C_in)
    for i in range(r):
        y = jnp.dot(x2d, w1_ref[i], preferred_element_type=f32) + b1_ref[i]
        a_ref[i, 1:TH + 1] = leaky(y, 0.01).reshape(TH, W, rC).astype(a_ref.dtype)

    # Row halos (shuffled rows just above / below the tile); zero at image edges.
    top_valid = (t > 0).astype(f32)
    yt = jnp.dot(xt_ref[0, 0], w1_ref[r - 1], preferred_element_type=f32) + b1_ref[r - 1]
    a_ref[r - 1, 0] = (leaky(yt, 0.01) * top_valid).astype(a_ref.dtype)

    bot_valid = (t < n_t - 1).astype(f32)
    yb = jnp.dot(xbo_ref[0, 0], w1_ref[0], preferred_element_type=f32) + b1_ref[0]
    a_ref[0, TH + 1] = (leaky(yb, 0.01) * bot_valid).astype(a_ref.dtype)

    # ---- conv3x3 (+bias, LeakyReLU 0.1) + identity branch, per sub-row i ------
    outs = []
    for i in range(r):
        acc = jnp.zeros((TH * W, rC), f32) + bc_ref[...]
        for dh in (-1, 0, 1):
            ip = (i + dh) % r                      # which sub-row plane
            dp = (i + dh - ip) // r                # source-row offset (-1, 0, +1)
            plane = a_ref[ip, 1 + dp:1 + dp + TH]  # (TH, W, rC)
            zcol = jnp.zeros((TH, 1, rC), plane.dtype)
            if W > 1:
                left = jnp.concatenate([zcol, plane[:, :W - 1, :]], axis=1)
                right = jnp.concatenate([plane[:, 1:, :], zcol], axis=1)
            else:
                left = jnp.zeros_like(plane)
                right = jnp.zeros_like(plane)
            for dq, shifted in ((-1, left), (0, plane), (1, right)):
                acc = acc + jnp.dot(shifted.reshape(TH * W, rC),
                                    wc_ref[dh + 1, dq + 1],
                                    preferred_element_type=f32)
        acc = leaky(acc, 0.1)
        # identity branch (upsample 1x1 conv), same fused (j, c) layout
        ident = jnp.dot(x2d, w1_ref[r + i], preferred_element_type=f32) + b1_ref[r + i]
        acc = acc + ident
        outs.append(acc.reshape(TH, 1, W, rC))
    o_ref[0] = jnp.concatenate(outs, axis=1).astype(o_ref.dtype)


# ---------------------------------------------------------------------------
# Parameter preparation (do this once, outside the hot path).
# Param convention (matches the reference below):
#   w_sub, w_up : (C_in, C_out*r*r)   conv1x1 weights, transposed (I, O), PyTorch
#                 output-channel order c*r*r + i*r + j (PixelShuffle semantics)
#   b_sub, b_up : (C_out*r*r,)
#   w_conv      : (3, 3, C_out, C_out) HWIO ;  b_conv : (C_out,)
# ---------------------------------------------------------------------------
def _prep_params(params, r, dtype):
    w_sub, b_sub, w_conv, b_conv, w_up, b_up = params
    C_in, Ct = w_sub.shape
    C_out = w_conv.shape[3]
    rC = r * C_out

    def prep_1x1(w, b):
        wr = w.reshape(C_in, C_out, r, r).transpose(0, 2, 3, 1)   # (ci, i, j, c)
        wr = wr.reshape(C_in, r, rC).transpose(1, 0, 2)           # (i, ci, j*C+c)
        br = b.reshape(C_out, r, r).transpose(1, 2, 0).reshape(r, 1, rC)
        return wr, br

    w_a, b_a = prep_1x1(w_sub, b_sub)          # branch 0: conv-path
    w_b, b_b = prep_1x1(w_up, b_up)            # branch 1: identity path
    w1x1 = jnp.concatenate([w_a, w_b], axis=0).astype(dtype)      # (2r, C_in, rC)
    b1x1 = jnp.concatenate([b_a, b_b], axis=0).astype(dtype)      # (2r, 1, rC)

    # Expanded 3x3 weight over the fused (j, c) lane layout:
    #   wcv[dh, dq, j'*C+ci, j*C+c] = K[dh, dw+1, ci, c]  iff dw := (dq-1)*r+j'-j in {-1,0,1}
    wcv = jnp.zeros((3, 3, rC, rC), dtype)
    for dq in range(3):
        for jp in range(r):
            for j in range(r):
                dw = (dq - 1) * r + jp - j
                if -1 <= dw <= 1:
                    wcv = wcv.at[:, dq, jp * C_out:(jp + 1) * C_out,
                                 j * C_out:(j + 1) * C_out].set(
                                     w_conv[:, dw + 1, :, :].astype(dtype))
    bcv = jnp.tile(b_conv, (r,)).reshape(1, rC).astype(dtype)
    return w1x1, b1x1, wcv, bcv, C_in, C_out, rC


# ---------------------------------------------------------------------------
# NHWC entry point (preferred) and NCHW PyTorch-layout wrapper.
# ---------------------------------------------------------------------------
def residual_block_upsample_nhwc(x_nhwc, params, upsample=2):
    r = upsample
    N, H, W, C_in = x_nhwc.shape
    dtype = x_nhwc.dtype
    isz = jnp.dtype(dtype).itemsize

    w1x1, b1x1, wcv, bcv, C_in_w, C_out, rC = _prep_params(params, r, dtype)
    assert C_in_w == C_in, (C_in_w, C_in)

    # ---- hardware-derived VMEM budget -> row-tile size (pre-upsample rows) ----
    try:
        vmem_cap = int(pltpu.get_tpu_info().vmem_capacity_bytes)
    except Exception:
        vmem_cap = 64 * 1024 * 1024                 # conservative (v7x per-TC)
    budget = vmem_cap // 4
    vmem_limit = min(int(vmem_cap * 3 // 4), 96 * 1024 * 1024)

    rCp = ((rC + 127) // 128) * 128                 # lane padding in VMEM
    per_row = W * (2 * C_in * isz                   # x body block (double-buffered)
                   + r * rCp * isz                  # A scratch
                   + 2 * r * rCp * isz              # output block (double-buffered)
                   + 8 * rCp * 4)                   # in-flight f32 working values
    fixed = ((2 * r * C_in * rCp + 2 * r * rCp + 9 * rCp * rCp + rCp) * isz
             + 4 * W * C_in * isz)                  # resident weights + halo rows
    cap_rows = max(1, (budget - fixed) // max(1, per_row))
    min_steps = 1 if N >= 2 else min(2, H)          # keep >= 2 grid steps (megacore)
    TH = _pick_tile(H, cap_rows, min_steps)
    nT = H // TH

    out5d = pl.pallas_call(
        _fused_res_up_kernel,
        grid=(N, nT),
        in_specs=[
            pl.BlockSpec((1, 1, W, C_in),
                         lambda n, t: (n, jnp.maximum(t * TH - 1, 0), 0, 0)),
            pl.BlockSpec((1, TH, W, C_in), lambda n, t: (n, t, 0, 0)),
            pl.BlockSpec((1, 1, W, C_in),
                         lambda n, t: (n, jnp.minimum((t + 1) * TH, H - 1), 0, 0)),
            pl.BlockSpec((2 * r, C_in, rC), lambda n, t: (0, 0, 0)),
            pl.BlockSpec((2 * r, 1, rC), lambda n, t: (0, 0, 0)),
            pl.BlockSpec((3, 3, rC, rC), lambda n, t: (0, 0, 0, 0)),
            pl.BlockSpec((1, rC), lambda n, t: (0, 0)),
        ],
        out_specs=pl.BlockSpec((1, TH, r, W, rC), lambda n, t: (n, t, 0, 0, 0)),
        out_shape=jax.ShapeDtypeStruct((N, H, r, W, rC), dtype),
        scratch_shapes=[pltpu.VMEM((r, TH + 2, W, rC), dtype)],
        compiler_params=pltpu.CompilerParams(
            dimension_semantics=("parallel", "parallel"),
            vmem_limit_bytes=int(vmem_limit)),
        cost_estimate=pl.CostEstimate(
            flops=int(4 * r * N * H * W * C_in * rC + 18 * N * H * W * r * rC * rC),
            transcendentals=0,
            bytes_accessed=int((N * H * W * C_in + N * H * W * r * r * C_out) * isz
                               + (2 * r * C_in * rC + 9 * rC * rC + 3 * rC) * isz)),
    )(x_nhwc, x_nhwc, x_nhwc, w1x1, b1x1, wcv, bcv)

    # Free (metadata-only) reshape: (N, H, r, W, r*C_out) row-major == shuffled NHWC.
    return out5d.reshape(N, H * r, W * r, C_out)


def residual_block_upsample(x_nchw, params, upsample=2):
    """NCHW wrapper matching the PyTorch module's layout."""
    # TODO(synk): these two transposes are XLA glue; prefer the NHWC entry point.
    x_nhwc = jnp.transpose(x_nchw, (0, 2, 3, 1))
    out = residual_block_upsample_nhwc(x_nhwc, params, upsample)
    return jnp.transpose(out, (0, 3, 1, 2))


# ---------------------------------------------------------------------------
# Pure-JAX reference (mirrors the PyTorch forward, NCHW) for validation.
# ---------------------------------------------------------------------------
def _reference(x_nchw, params, r=2):
    w_sub, b_sub, w_conv, b_conv, w_up, b_up = params

    def subpel(x, w, b):
        y = jnp.einsum('nchw,co->nohw', x, w) + b[None, :, None, None]
        N, Ct, H, W = y.shape
        C = Ct // (r * r)
        y = y.reshape(N, C, r, r, H, W)
        y = jnp.transpose(y, (0, 1, 4, 2, 5, 3)).reshape(N, C, H * r, W * r)
        return y

    out = subpel(x_nchw, w_sub, b_sub)
    out = jnp.where(out >= 0.0, out, 0.01 * out)          # nn.LeakyReLU() default
    w_oihw = jnp.transpose(w_conv, (3, 2, 0, 1))
    out = jax.lax.conv_general_dilated(
        out, w_oihw, window_strides=(1, 1), padding=((1, 1), (1, 1)),
        dimension_numbers=('NCHW', 'OIHW', 'NCHW')) + b_conv[None, :, None, None]
    out = jnp.where(out >= 0.0, out, 0.1 * out)           # nn.LeakyReLU(0.1)
    identity = subpel(x_nchw, w_up, b_up)
    return out + identity


if __name__ == "__main__":
    N, in_ch, out_ch, H, W, r = 2, 16, 16, 8, 8, 2

    key = jax.random.PRNGKey(0)
    k = jax.random.split(key, 7)
    x = jax.random.normal(k[0], (N, in_ch, H, W), jnp.float32)

    Ct = out_ch * r * r
    w_sub = 0.1 * jax.random.normal(k[1], (in_ch, Ct), jnp.float32)              # conv1x1 #1
    b_sub = 0.1 * jax.random.normal(k[2], (Ct,), jnp.float32)
    w_conv = 0.1 * jax.random.normal(k[3], (3, 3, out_ch, out_ch), jnp.float32)  # conv3x3
    b_conv = 0.1 * jax.random.normal(k[4], (out_ch,), jnp.float32)
    w_up = 0.1 * jax.random.normal(k[5], (in_ch, Ct), jnp.float32)               # conv1x1 #2
    b_up = 0.1 * jax.random.normal(k[6], (Ct,), jnp.float32)
    params = (w_sub, b_sub, w_conv, b_conv, w_up, b_up)

    out = jax.block_until_ready(residual_block_upsample(x, params, upsample=r))
    ref = jax.block_until_ready(_reference(x, params, r=r))

    assert out.shape == (N, out_ch, H * r, W * r), out.shape
    err = float(jnp.max(jnp.abs(out - ref)))
    assert jnp.allclose(out, ref, rtol=1e-3, atol=1e-3), err

    print("KERNEL_OK")
</pallas_src>

<mosaic_0001>
module attributes {stable_mosaic.version = 11 : i64} {
  func.func @_fused_res_up_kernel(%arg0: i32, %arg1: i32, %arg2: memref<1x1x8x16xf32, #tpu.memory_space<vmem>>, %arg3: memref<1x8x8x16xf32, #tpu.memory_space<vmem>>, %arg4: memref<1x1x8x16xf32, #tpu.memory_space<vmem>>, %arg5: memref<4x16x32xf32, #tpu.memory_space<vmem>>, %arg6: memref<4x1x32xf32, #tpu.memory_space<vmem>>, %arg7: memref<3x3x32x32xf32, #tpu.memory_space<vmem>>, %arg8: memref<1x32xf32, #tpu.memory_space<vmem>>, %arg9: memref<1x8x2x8x32xf32, #tpu.memory_space<vmem>>, %arg10: memref<2x10x8x32xf32, #tpu.memory_space<vmem>>) attributes {dimension_semantics = [#tpu.dimension_semantics<parallel>, #tpu.dimension_semantics<parallel>], iteration_bounds = array<i64: 2, 1>, scalar_prefetch = 0 : i64, scratch_operands = 1 : i64, tpu.core_type = #tpu.core_type<tc>, window_params = [{transform_indices = @transform_0, window_bounds = array<i64: 1, 1, 8, 16>}, {transform_indices = @transform_1, window_bounds = array<i64: 1, 8, 8, 16>}, {transform_indices = @transform_2, window_bounds = array<i64: 1, 1, 8, 16>}, {pipeline_mode = #tpu.pipeline_mode<synchronous>, transform_indices = @transform_3, window_bounds = array<i64: 4, 16, 32>}, {pipeline_mode = #tpu.pipeline_mode<synchronous>, transform_indices = @transform_4, window_bounds = array<i64: 4, 1, 32>}, {pipeline_mode = #tpu.pipeline_mode<synchronous>, transform_indices = @transform_5, window_bounds = array<i64: 3, 3, 32, 32>}, {pipeline_mode = #tpu.pipeline_mode<synchronous>, transform_indices = @transform_6, window_bounds = array<i64: 1, 32>}, {transform_indices = @transform_7, window_bounds = array<i64: 1, 8, 2, 8, 32>}]} {
    %c0 = arith.constant 0 : index
    %c0_0 = arith.constant 0 : index
    %c0_1 = arith.constant 0 : index
    %c0_2 = arith.constant 0 : index
    %0 = vector.load %arg3[%c0, %c0_0, %c0_1, %c0_2] : memref<1x8x8x16xf32, #tpu.memory_space<vmem>>, vector<1x8x8x16xf32>
    %1 = vector.shape_cast %0 : vector<1x8x8x16xf32> to vector<8x8x16xf32>
    %2 = vector.shape_cast %1 : vector<8x8x16xf32> to vector<64x16xf32>
    %c0_3 = arith.constant 0 : index
    %c0_4 = arith.constant 0 : index
    %c0_5 = arith.constant 0 : index
    %3 = vector.load %arg5[%c0_3, %c0_4, %c0_5] : memref<4x16x32xf32, #tpu.memory_space<vmem>>, vector<1x16x32xf32>
    %4 = vector.shape_cast %3 : vector<1x16x32xf32> to vector<16x32xf32>
    %cst = arith.constant dense<0.000000e+00> : vector<64x32xf32>
    %5 = tpu.matmul %2, %4, %cst {dimension_numbers = #tpu.dot_dimension_numbers<[1], [0], [0], [1], [0, 0, 1, 1], [], []>} : vector<64x16xf32>, vector<16x32xf32>, vector<64x32xf32> -> vector<64x32xf32>
    %c0_6 = arith.constant 0 : index
    %c0_7 = arith.constant 0 : index
    %c0_8 = arith.constant 0 : index
    %6 = vector.load %arg6[%c0_6, %c0_7, %c0_8] : memref<4x1x32xf32, #tpu.memory_space<vmem>>, vector<1x1x32xf32>
    %7 = vector.shape_cast %6 : vector<1x1x32xf32> to vector<1x32xf32>
    %8 = vector.broadcast %7 : vector<1x32xf32> to vector<64x32xf32>
    %9 = arith.addf %5, %8 : vector<64x32xf32>
    %cst_9 = arith.constant 0.000000e+00 : f32
    %10 = vector.broadcast %cst_9 : f32 to vector<64x32xf32>
    %11 = arith.cmpf oge, %9, %10 : vector<64x32xf32>
    %cst_10 = arith.constant 0.00999999977 : f32
    %12 = vector.broadcast %cst_10 : f32 to vector<64x32xf32>
    %13 = arith.mulf %12, %9 : vector<64x32xf32>
    %14 = arith.select %11, %9, %13 : vector<64x32xi1>, vector<64x32xf32>
    %15 = vector.shape_cast %14 : vector<64x32xf32> to vector<8x8x32xf32>
    %c0_11 = arith.constant 0 : index
    %c1 = arith.constant 1 : index
    %c0_12 = arith.constant 0 : index
    %c0_13 = arith.constant 0 : index
    %16 = vector.load %arg10[%c0_11, %c1, %c0_12, %c0_13] : memref<2x10x8x32xf32, #tpu.memory_space<vmem>>, vector<1x8x8x32xf32>
    %17 = vector.shape_cast %16 : vector<1x8x8x32xf32> to vector<8x8x32xf32>
    %18 = vector.shape_cast %15 : vector<8x8x32xf32> to vector<1x8x8x32xf32>
    tpu.vector_store %arg10[%c0_11, %c1, %c0_12, %c0_13], %18 {strides = array<i32>} : memref<2x10x8x32xf32, #tpu.memory_space<vmem>>, vector<1x8x8x32xf32>,
    %c1_14 = arith.constant 1 : index
    %c0_15 = arith.constant 0 : index
    %c0_16 = arith.constant 0 : index
    %19 = vector.load %arg5[%c1_14, %c0_15, %c0_16] : memref<4x16x32xf32, #tpu.memory_space<vmem>>, vector<1x16x32xf32>
    %20 = vector.shape_cast %19 : vector<1x16x32xf32> to vector<16x32xf32>
    %cst_17 = arith.constant dense<0.000000e+00> : vector<64x32xf32>
    %21 = tpu.matmul %2, %20, %cst_17 {dimension_numbers = #tpu.dot_dimension_numbers<[1], [0], [0], [1], [0, 0, 1, 1], [], []>} : vector<64x16xf32>, vector<16x32xf32>, vector<64x32xf32> -> vector<64x32xf32>
    %c1_18 = arith.constant 1 : index
    %c0_19 = arith.constant 0 : index
    %c0_20 = arith.constant 0 : index
    %22 = vector.load %arg6[%c1_18, %c0_19, %c0_20] : memref<4x1x32xf32, #tpu.memory_space<vmem>>, vector<1x1x32xf32>
    %23 = vector.shape_cast %22 : vector<1x1x32xf32> to vector<1x32xf32>
    %24 = vector.broadcast %23 : vector<1x32xf32> to vector<64x32xf32>
    %25 = arith.addf %21, %24 : vector<64x32xf32>
    %cst_21 = arith.constant 0.000000e+00 : f32
    %26 = vector.broadcast %cst_21 : f32 to vector<64x32xf32>
    %27 = arith.cmpf oge, %25, %26 : vector<64x32xf32>
    %cst_22 = arith.constant 0.00999999977 : f32
    %28 = vector.broadcast %cst_22 : f32 to vector<64x32xf32>
    %29 = arith.mulf %28, %25 : vector<64x32xf32>
    %30 = arith.select %27, %25, %29 : vector<64x32xi1>, vector<64x32xf32>
    %31 = vector.shape_cast %30 : vector<64x32xf32> to vector<8x8x32xf32>
    %c1_23 = arith.constant 1 : index
    %c1_24 = arith.constant 1 : index
    %c0_25 = arith.constant 0 : index
    %c0_26 = arith.constant 0 : index
    %32 = vector.load %arg10[%c1_23, %c1_24, %c0_25, %c0_26] : memref<2x10x8x32xf32, #tpu.memory_space<vmem>>, vector<1x8x8x32xf32>
    %33 = vector.shape_cast %32 : vector<1x8x8x32xf32> to vector<8x8x32xf32>
    %34 = vector.shape_cast %31 : vector<8x8x32xf32> to vector<1x8x8x32xf32>
    tpu.vector_store %arg10[%c1_23, %c1_24, %c0_25, %c0_26], %34 {strides = array<i32>} : memref<2x10x8x32xf32, #tpu.memory_space<vmem>>, vector<1x8x8x32xf32>,
    %c0_i32 = arith.constant 0 : i32
    %35 = arith.cmpi sgt, %arg1, %c0_i32 : i32
    %36 = arith.extui %35 : i1 to i32
    %37 = arith.sitofp %36 : i32 to f32
    %c0_27 = arith.constant 0 : index
    %c0_28 = arith.constant 0 : index
    %c0_29 = arith.constant 0 : index
    %c0_30 = arith.constant 0 : index
    %38 = vector.load %arg2[%c0_27, %c0_28, %c0_29, %c0_30] : memref<1x1x8x16xf32, #tpu.memory_space<vmem>>, vector<1x1x8x16xf32>
    %39 = vector.shape_cast %38 : vector<1x1x8x16xf32> to vector<8x16xf32>
    %c1_31 = arith.constant 1 : index
    %c0_32 = arith.constant 0 : index
    %c0_33 = arith.constant 0 : index
    %40 = vector.load %arg5[%c1_31, %c0_32, %c0_33] : memref<4x16x32xf32, #tpu.memory_space<vmem>>, vector<1x16x32xf32>
    %41 = vector.shape_cast %40 : vector<1x16x32xf32> to vector<16x32xf32>
    %cst_34 = arith.constant dense<0.000000e+00> : vector<8x32xf32>
    %42 = tpu.matmul %39, %41, %cst_34 {dimension_numbers = #tpu.dot_dimension_numbers<[1], [0], [0], [1], [0, 0, 1, 1], [], []>} : vector<8x16xf32>, vector<16x32xf32>, vector<8x32xf32> -> vector<8x32xf32>
    %c1_35 = arith.constant 1 : index
    %c0_36 = arith.constant 0 : index
    %c0_37 = arith.constant 0 : index
    %43 = vector.load %arg6[%c1_35, %c0_36, %c0_37] : memref<4x1x32xf32, #tpu.memory_space<vmem>>, vector<1x1x32xf32>
    %44 = vector.shape_cast %43 : vector<1x1x32xf32> to vector<1x32xf32>
    %45 = vector.broadcast %44 : vector<1x32xf32> to vector<8x32xf32>
    %46 = arith.addf %42, %45 : vector<8x32xf32>
    %cst_38 = arith.constant 0.000000e+00 : f32
    %47 = vector.broadcast %cst_38 : f32 to vector<8x32xf32>
    %48 = arith.cmpf oge, %46, %47 : vector<8x32xf32>
    %cst_39 = arith.constant 0.00999999977 : f32
    %49 = vector.broadcast %cst_39 : f32 to vector<8x32xf32>
    %50 = arith.mulf %49, %46 : vector<8x32xf32>
    %51 = arith.select %48, %46, %50 : vector<8x32xi1>, vector<8x32xf32>
    %52 = vector.broadcast %37 : f32 to vector<8x32xf32>
    %53 = arith.mulf %51, %52 : vector<8x32xf32>
    %c1_40 = arith.constant 1 : index
    %c0_41 = arith.constant 0 : index
    %c0_42 = arith.constant 0 : index
    %c0_43 = arith.constant 0 : index
    %54 = vector.load %arg10[%c1_40, %c0_41, %c0_42, %c0_43] : memref<2x10x8x32xf32, #tpu.memory_space<vmem>>, vector<1x1x8x32xf32>
    %55 = vector.shape_cast %54 : vector<1x1x8x32xf32> to vector<8x32xf32>
    %56 = vector.shape_cast %53 : vector<8x32xf32> to vector<1x1x8x32xf32>
    tpu.vector_store %arg10[%c1_40, %c0_41, %c0_42, %c0_43], %56 {strides = array<i32>} : memref<2x10x8x32xf32, #tpu.memory_space<vmem>>, vector<1x1x8x32xf32>,
    %c0_i32_44 = arith.constant 0 : i32
    %57 = arith.cmpi slt, %arg1, %c0_i32_44 : i32
    %58 = arith.extui %57 : i1 to i32
    %59 = arith.sitofp %58 : i32 to f32
    %c0_45 = arith.constant 0 : index
    %c0_46 = arith.constant 0 : index
    %c0_47 = arith.constant 0 : index
    %c0_48 = arith.constant 0 : index
    %60 = vector.load %arg4[%c0_45, %c0_46, %c0_47, %c0_48] : memref<1x1x8x16xf32, #tpu.memory_space<vmem>>, vector<1x1x8x16xf32>
    %61 = vector.shape_cast %60 : vector<1x1x8x16xf32> to vector<8x16xf32>
    %c0_49 = arith.constant 0 : index
    %c0_50 = arith.constant 0 : index
    %c0_51 = arith.constant 0 : index
    %62 = vector.load %arg5[%c0_49, %c0_50, %c0_51] : memref<4x16x32xf32, #tpu.memory_space<vmem>>, vector<1x16x32xf32>
    %63 = vector.shape_cast %62 : vector<1x16x32xf32> to vector<16x32xf32>
    %cst_52 = arith.constant dense<0.000000e+00> : vector<8x32xf32>
    %64 = tpu.matmul %61, %63, %cst_52 {dimension_numbers = #tpu.dot_dimension_numbers<[1], [0], [0], [1], [0, 0, 1, 1], [], []>} : vector<8x16xf32>, vector<16x32xf32>, vector<8x32xf32> -> vector<8x32xf32>
    %c0_53 = arith.constant 0 : index
    %c0_54 = arith.constant 0 : index
    %c0_55 = arith.constant 0 : index
    %65 = vector.load %arg6[%c0_53, %c0_54, %c0_55] : memref<4x1x32xf32, #tpu.memory_space<vmem>>, vector<1x1x32xf32>
    %66 = vector.shape_cast %65 : vector<1x1x32xf32> to vector<1x32xf32>
    %67 = vector.broadcast %66 : vector<1x32xf32> to vector<8x32xf32>
    %68 = arith.addf %64, %67 : vector<8x32xf32>
    %cst_56 = arith.constant 0.000000e+00 : f32
    %69 = vector.broadcast %cst_56 : f32 to vector<8x32xf32>
    %70 = arith.cmpf oge, %68, %69 : vector<8x32xf32>
    %cst_57 = arith.constant 0.00999999977 : f32
    %71 = vector.broadcast %cst_57 : f32 to vector<8x32xf32>
    %72 = arith.mulf %71, %68 : vector<8x32xf32>
    %73 = arith.select %70, %68, %72 : vector<8x32xi1>, vector<8x32xf32>
    %74 = vector.broadcast %59 : f32 to vector<8x32xf32>
    %75 = arith.mulf %73, %74 : vector<8x32xf32>
    %c0_58 = arith.constant 0 : index
    %c9 = arith.constant 9 : index
    %c0_59 = arith.constant 0 : index
    %c0_60 = arith.constant 0 : index
    %76 = vector.load %arg10[%c0_58, %c9, %c0_59, %c0_60] : memref<2x10x8x32xf32, #tpu.memory_space<vmem>>, vector<1x1x8x32xf32>
    %77 = vector.shape_cast %76 : vector<1x1x8x32xf32> to vector<8x32xf32>
    %78 = vector.shape_cast %75 : vector<8x32xf32> to vector<1x1x8x32xf32>
    tpu.vector_store %arg10[%c0_58, %c9, %c0_59, %c0_60], %78 {strides = array<i32>} : memref<2x10x8x32xf32, #tpu.memory_space<vmem>>, vector<1x1x8x32xf32>,
    %cst_61 = arith.constant 0.000000e+00 : f32
    %79 = vector.broadcast %cst_61 : f32 to vector<64x32xf32>
    %c0_62 = arith.constant 0 : index
    %c0_63 = arith.constant 0 : index
    %80 = vector.load %arg8[%c0_62, %c0_63] : memref<1x32xf32, #tpu.memory_space<vmem>>, vector<1x32xf32>
    %81 = vector.broadcast %80 : vector<1x32xf32> to vector<64x32xf32>
    %82 = arith.addf %79, %81 : vector<64x32xf32>
    %c1_64 = arith.constant 1 : index
    %c0_65 = arith.constant 0 : index
    %c0_66 = arith.constant 0 : index
    %c0_67 = arith.constant 0 : index
    %83 = vector.load %arg10[%c1_64, %c0_65, %c0_66, %c0_67] : memref<2x10x8x32xf32, #tpu.memory_space<vmem>>, vector<1x8x8x32xf32>
    %84 = vector.shape_cast %83 : vector<1x8x8x32xf32> to vector<8x8x32xf32>
    %cst_68 = arith.constant 0.000000e+00 : f32
    %85 = vector.broadcast %cst_68 : f32 to vector<8x1x32xf32>
    %86 = vector.extract_strided_slice %84 {offsets = [0, 0, 0], sizes = [8, 7, 32], strides = [1, 1, 1]} : vector<8x8x32xf32> to vector<8x7x32xf32>
    %87 = tpu.concatenate %85, %86 in 1 : vector<8x1x32xf32>, vector<8x7x32xf32> -> vector<8x8x32xf32>
    %88 = vector.extract_strided_slice %84 {offsets = [0, 1, 0], sizes = [8, 7, 32], strides = [1, 1, 1]} : vector<8x8x32xf32> to vector<8x7x32xf32>
    %89 = tpu.concatenate %88, %85 in 1 : vector<8x7x32xf32>, vector<8x1x32xf32> -> vector<8x8x32xf32>
    %90 = vector.shape_cast %87 : vector<8x8x32xf32> to vector<64x32xf32>
    %c0_69 = arith.constant 0 : index
    %c0_70 = arith.constant 0 : index
    %c0_71 = arith.constant 0 : index
    %c0_72 = arith.constant 0 : index
    %91 = vector.load %arg7[%c0_69, %c0_70, %c0_71, %c0_72] : memref<3x3x32x32xf32, #tpu.memory_space<vmem>>, vector<1x1x32x32xf32>
    %92 = vector.shape_cast %91 : vector<1x1x32x32xf32> to vector<32x32xf32>
    %cst_73 = arith.constant dense<0.000000e+00> : vector<64x32xf32>
    %93 = tpu.matmul %90, %92, %cst_73 {dimension_numbers = #tpu.dot_dimension_numbers<[1], [0], [0], [1], [0, 0, 1, 1], [], []>} : vector<64x32xf32>, vector<32x32xf32>, vector<64x32xf32> -> vector<64x32xf32>
    %94 = arith.addf %82, %93 : vector<64x32xf32>
    %95 = vector.shape_cast %84 : vector<8x8x32xf32> to vector<64x32xf32>
    %c0_74 = arith.constant 0 : index
    %c1_75 = arith.constant 1 : index
    %c0_76 = arith.constant 0 : index
    %c0_77 = arith.constant 0 : index
    %96 = vector.load %arg7[%c0_74, %c1_75, %c0_76, %c0_77] : memref<3x3x32x32xf32, #tpu.memory_space<vmem>>, vector<1x1x32x32xf32>
    %97 = vector.shape_cast %96 : vector<1x1x32x32xf32> to vector<32x32xf32>
    %cst_78 = arith.constant dense<0.000000e+00> : vector<64x32xf32>
    %98 = tpu.matmul %95, %97, %cst_78 {dimension_numbers = #tpu.dot_dimension_numbers<[1], [0], [0], [1], [0, 0, 1, 1], [], []>} : vector<64x32xf32>, vector<32x32xf32>, vector<64x32xf32> -> vector<64x32xf32>
    %99 = arith.addf %94, %98 : vector<64x32xf32>
    %100 = vector.shape_cast %89 : vector<8x8x32xf32> to vector<64x32xf32>
    %c0_79 = arith.constant 0 : index
    %c2 = arith.constant 2 : index
    %c0_80 = arith.constant 0 : index
    %c0_81 = arith.constant 0 : index
    %101 = vector.load %arg7[%c0_79, %c2, %c0_80, %c0_81] : memref<3x3x32x32xf32, #tpu.memory_space<vmem>>, vector<1x1x32x32xf32>
    %102 = vector.shape_cast %101 : vector<1x1x32x32xf32> to vector<32x32xf32>
    %cst_82 = arith.constant dense<0.000000e+00> : vector<64x32xf32>
    %103 = tpu.matmul %100, %102, %cst_82 {dimension_numbers = #tpu.dot_dimension_numbers<[1], [0], [0], [1], [0, 0, 1, 1], [], []>} : vector<64x32xf32>, vector<32x32xf32>, vector<64x32xf32> -> vector<64x32xf32>
    %104 = arith.addf %99, %103 : vector<64x32xf32>
    %c0_83 = arith.constant 0 : index
    %c1_84 = arith.constant 1 : index
    %c0_85 = arith.constant 0 : index
    %c0_86 = arith.constant 0 : index
    %105 = vector.load %arg10[%c0_83, %c1_84, %c0_85, %c0_86] : memref<2x10x8x32xf32, #tpu.memory_space<vmem>>, vector<1x8x8x32xf32>
    %106 = vector.shape_cast %105 : vector<1x8x8x32xf32> to vector<8x8x32xf32>
    %cst_87 = arith.constant 0.000000e+00 : f32
    %107 = vector.broadcast %cst_87 : f32 to vector<8x1x32xf32>
    %108 = vector.extract_strided_slice %106 {offsets = [0, 0, 0], sizes = [8, 7, 32], strides = [1, 1, 1]} : vector<8x8x32xf32> to vector<8x7x32xf32>
    %109 = tpu.concatenate %107, %108 in 1 : vector<8x1x32xf32>, vector<8x7x32xf32> -> vector<8x8x32xf32>
    %110 = vector.extract_strided_slice %106 {offsets = [0, 1, 0], sizes = [8, 7, 32], strides = [1, 1, 1]} : vector<8x8x32xf32> to vector<8x7x32xf32>
    %111 = tpu.concatenate %110, %107 in 1 : vector<8x7x32xf32>, vector<8x1x32xf32> -> vector<8x8x32xf32>
    %112 = vector.shape_cast %109 : vector<8x8x32xf32> to vector<64x32xf32>
    %c1_88 = arith.constant 1 : index
    %c0_89 = arith.constant 0 : index
    %c0_90 = arith.constant 0 : index
    %c0_91 = arith.constant 0 : index
    %113 = vector.load %arg7[%c1_88, %c0_89, %c0_90, %c0_91] : memref<3x3x32x32xf32, #tpu.memory_space<vmem>>, vector<1x1x32x32xf32>
    %114 = vector.shape_cast %113 : vector<1x1x32x32xf32> to vector<32x32xf32>
    %cst_92 = arith.constant dense<0.000000e+00> : vector<64x32xf32>
    %115 = tpu.matmul %112, %114, %cst_92 {dimension_numbers = #tpu.dot_dimension_numbers<[1], [0], [0], [1], [0, 0, 1, 1], [], []>} : vector<64x32xf32>, vector<32x32xf32>, vector<64x32xf32> -> vector<64x32xf32>
    %116 = arith.addf %104, %115 : vector<64x32xf32>
    %117 = vector.shape_cast %106 : vector<8x8x32xf32> to vector<64x32xf32>
    %c1_93 = arith.constant 1 : index
    %c1_94 = arith.constant 1 : index
    %c0_95 = arith.constant 0 : index
    %c0_96 = arith.constant 0 : index
    %118 = vector.load %arg7[%c1_93, %c1_94, %c0_95, %c0_96] : memref<3x3x32x32xf32, #tpu.memory_space<vmem>>, vector<1x1x32x32xf32>
    %119 = vector.shape_cast %118 : vector<1x1x32x32xf32> to vector<32x32xf32>
    %cst_97 = arith.constant dense<0.000000e+00> : vector<64x32xf32>
    %120 = tpu.matmul %117, %119, %cst_97 {dimension_numbers = #tpu.dot_dimension_numbers<[1], [0], [0], [1], [0, 0, 1, 1], [], []>} : vector<64x32xf32>, vector<32x32xf32>, vector<64x32xf32> -> vector<64x32xf32>
    %121 = arith.addf %116, %120 : vector<64x32xf32>
    %122 = vector.shape_cast %111 : vector<8x8x32xf32> to vector<64x32xf32>
    %c1_98 = arith.constant 1 : index
    %c2_99 = arith.constant 2 : index
    %c0_100 = arith.constant 0 : index
    %c0_101 = arith.constant 0 : index
    %123 = vector.load %arg7[%c1_98, %c2_99, %c0_100, %c0_101] : memref<3x3x32x32xf32, #tpu.memory_space<vmem>>, vector<1x1x32x32xf32>
    %124 = vector.shape_cast %123 : vector<1x1x32x32xf32> to vector<32x32xf32>
    %cst_102 = arith.constant dense<0.000000e+00> : vector<64x32xf32>
    %125 = tpu.matmul %122, %124, %cst_102 {dimension_numbers = #tpu.dot_dimension_numbers<[1], [0], [0], [1], [0, 0, 1, 1], [], []>} : vector<64x32xf32>, vector<32x32xf32>, vector<64x32xf32> -> vector<64x32xf32>
    %126 = arith.addf %121, %125 : vector<64x32xf32>
    %c1_103 = arith.constant 1 : index
    %c1_104 = arith.constant 1 : index
    %c0_105 = arith.constant 0 : index
    %c0_106 = arith.constant 0 : index
    %127 = vector.load %arg10[%c1_103, %c1_104, %c0_105, %c0_106] : memref<2x10x8x32xf32, #tpu.memory_space<vmem>>, vector<1x8x8x32xf32>
    %128 = vector.shape_cast %127 : vector<1x8x8x32xf32> to vector<8x8x32xf32>
    %cst_107 = arith.constant 0.000000e+00 : f32
    %129 = vector.broadcast %cst_107 : f32 to vector<8x1x32xf32>
    %130 = vector.extract_strided_slice %128 {offsets = [0, 0, 0], sizes = [8, 7, 32], strides = [1, 1, 1]} : vector<8x8x32xf32> to vector<8x7x32xf32>
    %131 = tpu.concatenate %129, %130 in 1 : vector<8x1x32xf32>, vector<8x7x32xf32> -> vector<8x8x32xf32>
    %132 = vector.extract_strided_slice %128 {offsets = [0, 1, 0], sizes = [8, 7, 32], strides = [1, 1, 1]} : vector<8x8x32xf32> to vector<8x7x32xf32>
    %133 = tpu.concatenate %132, %129 in 1 : vector<8x7x32xf32>, vector<8x1x32xf32> -> vector<8x8x32xf32>
    %134 = vector.shape_cast %131 : vector<8x8x32xf32> to vector<64x32xf32>
    %c2_108 = arith.constant 2 : index
    %c0_109 = arith.constant 0 : index
    %c0_110 = arith.constant 0 : index
    %c0_111 = arith.constant 0 : index
    %135 = vector.load %arg7[%c2_108, %c0_109, %c0_110, %c0_111] : memref<3x3x32x32xf32, #tpu.memory_space<vmem>>, vector<1x1x32x32xf32>
    %136 = vector.shape_cast %135 : vector<1x1x32x32xf32> to vector<32x32xf32>
    %cst_112 = arith.constant dense<0.000000e+00> : vector<64x32xf32>
    %137 = tpu.matmul %134, %136, %cst_112 {dimension_numbers = #tpu.dot_dimension_numbers<[1], [0], [0], [1], [0, 0, 1, 1], [], []>} : vector<64x32xf32>, vector<32x32xf32>, vector<64x32xf32> -> vector<64x32xf32>
    %138 = arith.addf %126, %137 : vector<64x32xf32>
    %139 = vector.shape_cast %128 : vector<8x8x32xf32> to vector<64x32xf32>
    %c2_113 = arith.constant 2 : index
    %c1_114 = arith.constant 1 : index
    %c0_115 = arith.constant 0 : index
    %c0_116 = arith.constant 0 : index
    %140 = vector.load %arg7[%c2_113, %c1_114, %c0_115, %c0_116] : memref<3x3x32x32xf32, #tpu.memory_space<vmem>>, vector<1x1x32x32xf32>
    %141 = vector.shape_cast %140 : vector<1x1x32x32xf32> to vector<32x32xf32>
    %cst_117 = arith.constant dense<0.000000e+00> : vector<64x32xf32>
    %142 = tpu.matmul %139, %141, %cst_117 {dimension_numbers = #tpu.dot_dimension_numbers<[1], [0], [0], [1], [0, 0, 1, 1], [], []>} : vector<64x32xf32>, vector<32x32xf32>, vector<64x32xf32> -> vector<64x32xf32>
    %143 = arith.addf %138, %142 : vector<64x32xf32>
    %144 = vector.shape_cast %133 : vector<8x8x32xf32> to vector<64x32xf32>
    %c2_118 = arith.constant 2 : index
    %c2_119 = arith.constant 2 : index
    %c0_120 = arith.constant 0 : index
    %c0_121 = arith.constant 0 : index
    %145 = vector.load %arg7[%c2_118, %c2_119, %c0_120, %c0_121] : memref<3x3x32x32xf32, #tpu.memory_space<vmem>>, vector<1x1x32x32xf32>
    %146 = vector.shape_cast %145 : vector<1x1x32x32xf32> to vector<32x32xf32>
    %cst_122 = arith.constant dense<0.000000e+00> : vector<64x32xf32>
    %147 = tpu.matmul %144, %146, %cst_122 {dimension_numbers = #tpu.dot_dimension_numbers<[1], [0], [0], [1], [0, 0, 1, 1], [], []>} : vector<64x32xf32>, vector<32x32xf32>, vector<64x32xf32> -> vector<64x32xf32>
    %148 = arith.addf %143, %147 : vector<64x32xf32>
    %cst_123 = arith.constant 0.000000e+00 : f32
    %149 = vector.broadcast %cst_123 : f32 to vector<64x32xf32>
    %150 = arith.cmpf oge, %148, %149 : vector<64x32xf32>
    %cst_124 = arith.constant 1.000000e-01 : f32
    %151 = vector.broadcast %cst_124 : f32 to vector<64x32xf32>
    %152 = arith.mulf %151, %148 : vector<64x32xf32>
    %153 = arith.select %150, %148, %152 : vector<64x32xi1>, vector<64x32xf32>
    %c2_125 = arith.constant 2 : index
    %c0_126 = arith.constant 0 : index
    %c0_127 = arith.constant 0 : index
    %154 = vector.load %arg5[%c2_125, %c0_126, %c0_127] : memref<4x16x32xf32, #tpu.memory_space<vmem>>, vector<1x16x32xf32>
    %155 = vector.shape_cast %154 : vector<1x16x32xf32> to vector<16x32xf32>
    %cst_128 = arith.constant dense<0.000000e+00> : vector<64x32xf32>
    %156 = tpu.matmul %2, %155, %cst_128 {dimension_numbers = #tpu.dot_dimension_numbers<[1], [0], [0], [1], [0, 0, 1, 1], [], []>} : vector<64x16xf32>, vector<16x32xf32>, vector<64x32xf32> -> vector<64x32xf32>
    %c2_129 = arith.constant 2 : index
    %c0_130 = arith.constant 0 : index
    %c0_131 = arith.constant 0 : index
    %157 = vector.load %arg6[%c2_129, %c0_130, %c0_131] : memref<4x1x32xf32, #tpu.memory_space<vmem>>, vector<1x1x32xf32>
    %158 = vector.shape_cast %157 : vector<1x1x32xf32> to vector<1x32xf32>
    %159 = vector.broadcast %158 : vector<1x32xf32> to vector<64x32xf32>
    %160 = arith.addf %156, %159 : vector<64x32xf32>
    %161 = arith.addf %153, %160 : vector<64x32xf32>
    %162 = vector.shape_cast %161 : vector<64x32xf32> to vector<8x1x8x32xf32>
    %cst_132 = arith.constant 0.000000e+00 : f32
    %163 = vector.broadcast %cst_132 : f32 to vector<64x32xf32>
    %c0_133 = arith.constant 0 : index
    %c0_134 = arith.constant 0 : index
    %164 = vector.load %arg8[%c0_133, %c0_134] : memref<1x32xf32, #tpu.memory_space<vmem>>, vector<1x32xf32>
    %165 = vector.broadcast %164 : vector<1x32xf32> to vector<64x32xf32>
    %166 = arith.addf %163, %165 : vector<64x32xf32>
    %c0_135 = arith.constant 0 : index
    %c1_136 = arith.constant 1 : index
    %c0_137 = arith.constant 0 : index
    %c0_138 = arith.constant 0 : index
    %167 = vector.load %arg10[%c0_135, %c1_136, %c0_137, %c0_138] : memref<2x10x8x32xf32, #tpu.memory_space<vmem>>, vector<1x8x8x32xf32>
    %168 = vector.shape_cast %167 : vector<1x8x8x32xf32> to vector<8x8x32xf32>
    %cst_139 = arith.constant 0.000000e+00 : f32
    %169 = vector.broadcast %cst_139 : f32 to vector<8x1x32xf32>
    %170 = vector.extract_strided_slice %168 {offsets = [0, 0, 0], sizes = [8, 7, 32], strides = [1, 1, 1]} : vector<8x8x32xf32> to vector<8x7x32xf32>
    %171 = tpu.concatenate %169, %170 in 1 : vector<8x1x32xf32>, vector<8x7x32xf32> -> vector<8x8x32xf32>
    %172 = vector.extract_strided_slice %168 {offsets = [0, 1, 0], sizes = [8, 7, 32], strides = [1, 1, 1]} : vector<8x8x32xf32> to vector<8x7x32xf32>
    %173 = tpu.concatenate %172, %169 in 1 : vector<8x7x32xf32>, vector<8x1x32xf32> -> vector<8x8x32xf32>
    %174 = vector.shape_cast %171 : vector<8x8x32xf32> to vector<64x32xf32>
    %c0_140 = arith.constant 0 : index
    %c0_141 = arith.constant 0 : index
    %c0_142 = arith.constant 0 : index
    %c0_143 = arith.constant 0 : index
    %175 = vector.load %arg7[%c0_140, %c0_141, %c0_142, %c0_143] : memref<3x3x32x32xf32, #tpu.memory_space<vmem>>, vector<1x1x32x32xf32>
    %176 = vector.shape_cast %175 : vector<1x1x32x32xf32> to vector<32x32xf32>
    %cst_144 = arith.constant dense<0.000000e+00> : vector<64x32xf32>
    %177 = tpu.matmul %174, %176, %cst_144 {dimension_numbers = #tpu.dot_dimension_numbers<[1], [0], [0], [1], [0, 0, 1, 1], [], []>} : vector<64x32xf32>, vector<32x32xf32>, vector<64x32xf32> -> vector<64x32xf32>
    %178 = arith.addf %166, %177 : vector<64x32xf32>
    %179 = vector.shape_cast %168 : vector<8x8x32xf32> to vector<64x32xf32>
    %c0_145 = arith.constant 0 : index
    %c1_146 = arith.constant 1 : index
    %c0_147 = arith.constant 0 : index
    %c0_148 = arith.constant 0 : index
    %180 = vector.load %arg7[%c0_145, %c1_146, %c0_147, %c0_148] : memref<3x3x32x32xf32, #tpu.memory_space<vmem>>, vector<1x1x32x32xf32>
    %181 = vector.shape_cast %180 : vector<1x1x32x32xf32> to vector<32x32xf32>
    %cst_149 = arith.constant dense<0.000000e+00> : vector<64x32xf32>
    %182 = tpu.matmul %179, %181, %cst_149 {dimension_numbers = #tpu.dot_dimension_numbers<[1], [0], [0], [1], [0, 0, 1, 1], [], []>} : vector<64x32xf32>, vector<32x32xf32>, vector<64x32xf32> -> vector<64x32xf32>
    %183 = arith.addf %178, %182 : vector<64x32xf32>
    %184 = vector.shape_cast %173 : vector<8x8x32xf32> to vector<64x32xf32>
    %c0_150 = arith.constant 0 : index
    %c2_151 = arith.constant 2 : index
    %c0_152 = arith.constant 0 : index
    %c0_153 = arith.constant 0 : index
    %185 = vector.load %arg7[%c0_150, %c2_151, %c0_152, %c0_153] : memref<3x3x32x32xf32, #tpu.memory_space<vmem>>, vector<1x1x32x32xf32>
    %186 = vector.shape_cast %185 : vector<1x1x32x32xf32> to vector<32x32xf32>
    %cst_154 = arith.constant dense<0.000000e+00> : vector<64x32xf32>
    %187 = tpu.matmul %184, %186, %cst_154 {dimension_numbers = #tpu.dot_dimension_numbers<[1], [0], [0], [1], [0, 0, 1, 1], [], []>} : vector<64x32xf32>, vector<32x32xf32>, vector<64x32xf32> -> vector<64x32xf32>
    %188 = arith.addf %183, %187 : vector<64x32xf32>
    %c1_155 = arith.constant 1 : index
    %c1_156 = arith.constant 1 : index
    %c0_157 = arith.constant 0 : index
    %c0_158 = arith.constant 0 : index
    %189 = vector.load %arg10[%c1_155, %c1_156, %c0_157, %c0_158] : memref<2x10x8x32xf32, #tpu.memory_space<vmem>>, vector<1x8x8x32xf32>
    %190 = vector.shape_cast %189 : vector<1x8x8x32xf32> to vector<8x8x32xf32>
    %cst_159 = arith.constant 0.000000e+00 : f32
    %191 = vector.broadcast %cst_159 : f32 to vector<8x1x32xf32>
    %192 = vector.extract_strided_slice %190 {offsets = [0, 0, 0], sizes = [8, 7, 32], strides = [1, 1, 1]} : vector<8x8x32xf32> to vector<8x7x32xf32>
    %193 = tpu.concatenate %191, %192 in 1 : vector<8x1x32xf32>, vector<8x7x32xf32> -> vector<8x8x32xf32>
    %194 = vector.extract_strided_slice %190 {offsets = [0, 1, 0], sizes = [8, 7, 32], strides = [1, 1, 1]} : vector<8x8x32xf32> to vector<8x7x32xf32>
    %195 = tpu.concatenate %194, %191 in 1 : vector<8x7x32xf32>, vector<8x1x32xf32> -> vector<8x8x32xf32>
    %196 = vector.shape_cast %193 : vector<8x8x32xf32> to vector<64x32xf32>
    %c1_160 = arith.constant 1 : index
    %c0_161 = arith.constant 0 : index
    %c0_162 = arith.constant 0 : index
    %c0_163 = arith.constant 0 : index
    %197 = vector.load %arg7[%c1_160, %c0_161, %c0_162, %c0_163] : memref<3x3x32x32xf32, #tpu.memory_space<vmem>>, vector<1x1x32x32xf32>
    %198 = vector.shape_cast %197 : vector<1x1x32x32xf32> to vector<32x32xf32>
    %cst_164 = arith.constant dense<0.000000e+00> : vector<64x32xf32>
    %199 = tpu.matmul %196, %198, %cst_164 {dimension_numbers = #tpu.dot_dimension_numbers<[1], [0], [0], [1], [0, 0, 1, 1], [], []>} : vector<64x32xf32>, vector<32x32xf32>, vector<64x32xf32> -> vector<64x32xf32>
    %200 = arith.addf %188, %199 : vector<64x32xf32>
    %201 = vector.shape_cast %190 : vector<8x8x32xf32> to vector<64x32xf32>
    %c1_165 = arith.constant 1 : index
    %c1_166 = arith.constant 1 : index
    %c0_167 = arith.constant 0 : index
    %c0_168 = arith.constant 0 : index
    %202 = vector.load %arg7[%c1_165, %c1_166, %c0_167, %c0_168] : memref<3x3x32x32xf32, #tpu.memory_space<vmem>>, vector<1x1x32x32xf32>
    %203 = vector.shape_cast %202 : vector<1x1x32x32xf32> to vector<32x32xf32>
    %cst_169 = arith.constant dense<0.000000e+00> : vector<64x32xf32>
    %204 = tpu.matmul %201, %203, %cst_169 {dimension_numbers = #tpu.dot_dimension_numbers<[1], [0], [0], [1], [0, 0, 1, 1], [], []>} : vector<64x32xf32>, vector<32x32xf32>, vector<64x32xf32> -> vector<64x32xf32>
    %205 = arith.addf %200, %204 : vector<64x32xf32>
    %206 = vector.shape_cast %195 : vector<8x8x32xf32> to vector<64x32xf32>
    %c1_170 = arith.constant 1 : index
    %c2_171 = arith.constant 2 : index
    %c0_172 = arith.constant 0 : index
    %c0_173 = arith.constant 0 : index
    %207 = vector.load %arg7[%c1_170, %c2_171, %c0_172, %c0_173] : memref<3x3x32x32xf32, #tpu.memory_space<vmem>>, vector<1x1x32x32xf32>
    %208 = vector.shape_cast %207 : vector<1x1x32x32xf32> to vector<32x32xf32>
    %cst_174 = arith.constant dense<0.000000e+00> : vector<64x32xf32>
    %209 = tpu.matmul %206, %208, %cst_174 {dimension_numbers = #tpu.dot_dimension_numbers<[1], [0], [0], [1], [0, 0, 1, 1], [], []>} : vector<64x32xf32>, vector<32x32xf32>, vector<64x32xf32> -> vector<64x32xf32>
    %210 = arith.addf %205, %209 : vector<64x32xf32>
    %c0_175 = arith.constant 0 : index
    %c2_176 = arith.constant 2 : index
    %c0_177 = arith.constant 0 : index
    %c0_178 = arith.constant 0 : index
    %211 = vector.load %arg10[%c0_175, %c2_176, %c0_177, %c0_178] : memref<2x10x8x32xf32, #tpu.memory_space<vmem>>, vector<1x8x8x32xf32>
    %212 = vector.shape_cast %211 : vector<1x8x8x32xf32> to vector<8x8x32xf32>
    %cst_179 = arith.constant 0.000000e+00 : f32
    %213 = vector.broadcast %cst_179 : f32 to vector<8x1x32xf32>
    %214 = vector.extract_strided_slice %212 {offsets = [0, 0, 0], sizes = [8, 7, 32], strides = [1, 1, 1]} : vector<8x8x32xf32> to vector<8x7x32xf32>
    %215 = tpu.concatenate %213, %214 in 1 : vector<8x1x32xf32>, vector<8x7x32xf32> -> vector<8x8x32xf32>
    %216 = vector.extract_strided_slice %212 {offsets = [0, 1, 0], sizes = [8, 7, 32], strides = [1, 1, 1]} : vector<8x8x32xf32> to vector<8x7x32xf32>
    %217 = tpu.concatenate %216, %213 in 1 : vector<8x7x32xf32>, vector<8x1x32xf32> -> vector<8x8x32xf32>
    %218 = vector.shape_cast %215 : vector<8x8x32xf32> to vector<64x32xf32>
    %c2_180 = arith.constant 2 : index
    %c0_181 = arith.constant 0 : index
    %c0_182 = arith.constant 0 : index
    %c0_183 = arith.constant 0 : index
    %219 = vector.load %arg7[%c2_180, %c0_181, %c0_182, %c0_183] : memref<3x3x32x32xf32, #tpu.memory_space<vmem>>, vector<1x1x32x32xf32>
    %220 = vector.shape_cast %219 : vector<1x1x32x32xf32> to vector<32x32xf32>
    %cst_184 = arith.constant dense<0.000000e+00> : vector<64x32xf32>
    %221 = tpu.matmul %218, %220, %cst_184 {dimension_numbers = #tpu.dot_dimension_numbers<[1], [0], [0], [1], [0, 0, 1, 1], [], []>} : vector<64x32xf32>, vector<32x32xf32>, vector<64x32xf32> -> vector<64x32xf32>
    %222 = arith.addf %210, %221 : vector<64x32xf32>
    %223 = vector.shape_cast %212 : vector<8x8x32xf32> to vector<64x32xf32>
    %c2_185 = arith.constant 2 : index
    %c1_186 = arith.constant 1 : index
    %c0_187 = arith.constant 0 : index
    %c0_188 = arith.constant 0 : index
    %224 = vector.load %arg7[%c2_185, %c1_186, %c0_187, %c0_188] : memref<3x3x32x32xf32, #tpu.memory_space<vmem>>, vector<1x1x32x32xf32>
    %225 = vector.shape_cast %224 : vector<1x1x32x32xf32> to vector<32x32xf32>
    %cst_189 = arith.constant dense<0.000000e+00> : vector<64x32xf32>
    %226 = tpu.matmul %223, %225, %cst_189 {dimension_numbers = #tpu.dot_dimension_numbers<[1], [0], [0], [1], [0, 0, 1, 1], [], []>} : vector<64x32xf32>, vector<32x32xf32>, vector<64x32xf32> -> vector<64x32xf32>
    %227 = arith.addf %222, %226 : vector<64x32xf32>
    %228 = vector.shape_cast %217 : vector<8x8x32xf32> to vector<64x32xf32>
    %c2_190 = arith.constant 2 : index
    %c2_191 = arith.constant 2 : index
    %c0_192 = arith.constant 0 : index
    %c0_193 = arith.constant 0 : index
    %229 = vector.load %arg7[%c2_190, %c2_191, %c0_192, %c0_193] : memref<3x3x32x32xf32, #tpu.memory_space<vmem>>, vector<1x1x32x32xf32>
    %230 = vector.shape_cast %229 : vector<1x1x32x32xf32> to vector<32x32xf32>
    %cst_194 = arith.constant dense<0.000000e+00> : vector<64x32xf32>
    %231 = tpu.matmul %228, %230, %cst_194 {dimension_numbers = #tpu.dot_dimension_numbers<[1], [0], [0], [1], [0, 0, 1, 1], [], []>} : vector<64x32xf32>, vector<32x32xf32>, vector<64x32xf32> -> vector<64x32xf32>
    %232 = arith.addf %227, %231 : vector<64x32xf32>
    %cst_195 = arith.constant 0.000000e+00 : f32
    %233 = vector.broadcast %cst_195 : f32 to vector<64x32xf32>
    %234 = arith.cmpf oge, %232, %233 : vector<64x32xf32>
    %cst_196 = arith.constant 1.000000e-01 : f32
    %235 = vector.broadcast %cst_196 : f32 to vector<64x32xf32>
    %236 = arith.mulf %235, %232 : vector<64x32xf32>
    %237 = arith.select %234, %232, %236 : vector<64x32xi1>, vector<64x32xf32>
    %c3 = arith.constant 3 : index
    %c0_197 = arith.constant 0 : index
    %c0_198 = arith.constant 0 : index
    %238 = vector.load %arg5[%c3, %c0_197, %c0_198] : memref<4x16x32xf32, #tpu.memory_space<vmem>>, vector<1x16x32xf32>
    %239 = vector.shape_cast %238 : vector<1x16x32xf32> to vector<16x32xf32>
    %cst_199 = arith.constant dense<0.000000e+00> : vector<64x32xf32>
    %240 = tpu.matmul %2, %239, %cst_199 {dimension_numbers = #tpu.dot_dimension_numbers<[1], [0], [0], [1], [0, 0, 1, 1], [], []>} : vector<64x16xf32>, vector<16x32xf32>, vector<64x32xf32> -> vector<64x32xf32>
    %c3_200 = arith.constant 3 : index
    %c0_201 = arith.constant 0 : index
    %c0_202 = arith.constant 0 : index
    %241 = vector.load %arg6[%c3_200, %c0_201, %c0_202] : memref<4x1x32xf32, #tpu.memory_space<vmem>>, vector<1x1x32xf32>
    %242 = vector.shape_cast %241 : vector<1x1x32xf32> to vector<1x32xf32>
    %243 = vector.broadcast %242 : vector<1x32xf32> to vector<64x32xf32>
    %244 = arith.addf %240, %243 : vector<64x32xf32>
    %245 = arith.addf %237, %244 : vector<64x32xf32>
    %246 = vector.shape_cast %245 : vector<64x32xf32> to vector<8x1x8x32xf32>
    %247 = tpu.concatenate %162, %246 in 1 : vector<8x1x8x32xf32>, vector<8x1x8x32xf32> -> vector<8x2x8x32xf32>
    %c0_203 = arith.constant 0 : index
    %c0_204 = arith.constant 0 : index
    %c0_205 = arith.constant 0 : index
    %c0_206 = arith.constant 0 : index
    %c0_207 = arith.constant 0 : index
    %248 = vector.load %arg9[%c0_203, %c0_204, %c0_205, %c0_206, %c0_207] : memref<1x8x2x8x32xf32, #tpu.memory_space<vmem>>, vector<1x8x2x8x32xf32>
    %249 = vector.shape_cast %248 : vector<1x8x2x8x32xf32> to vector<8x2x8x32xf32>
    %250 = vector.shape_cast %247 : vector<8x2x8x32xf32> to vector<1x8x2x8x32xf32>
    tpu.vector_store %arg9[%c0_203, %c0_204, %c0_205, %c0_206, %c0_207], %250 {strides = array<i32>} : memref<1x8x2x8x32xf32, #tpu.memory_space<vmem>>, vector<1x8x2x8x32xf32>,
    return
  }
  func.func @transform_0(%arg0: i32, %arg1: i32) -> (i32, i32, i32, i32) {
    %c8_i32 = arith.constant 8 : i32
    %0 = arith.muli %arg1, %c8_i32 : i32
    %c1_i32 = arith.constant 1 : i32
    %1 = arith.subi %0, %c1_i32 : i32
    %c0_i32 = arith.constant 0 : i32
    %2 = arith.maxsi %1, %c0_i32 : i32
    %c0_i32_0 = arith.constant 0 : i32
    %c0_i32_1 = arith.constant 0 : i32
    %c0_i32_2 = arith.constant 0 : i32
    return %arg0, %2, %c0_i32_0, %c0_i32_1 : i32, i32, i32, i32
  }
  func.func @transform_1(%arg0: i32, %arg1: i32) -> (i32, i32, i32, i32) {
    %c0_i32 = arith.constant 0 : i32
    %c0_i32_0 = arith.constant 0 : i32
    %c0_i32_1 = arith.constant 0 : i32
    return %arg0, %arg1, %c0_i32, %c0_i32_0 : i32, i32, i32, i32
  }
  func.func @transform_2(%arg0: i32, %arg1: i32) -> (i32, i32, i32, i32) {
    %c1_i32 = arith.constant 1 : i32
    %0 = arith.addi %arg1, %c1_i32 : i32
    %c8_i32 = arith.constant 8 : i32
    %1 = arith.muli %0, %c8_i32 : i32
    %c7_i32 = arith.constant 7 : i32
    %2 = arith.minsi %1, %c7_i32 : i32
    %c0_i32 = arith.constant 0 : i32
    %c0_i32_0 = arith.constant 0 : i32
    %c0_i32_1 = arith.constant 0 : i32
    return %arg0, %2, %c0_i32, %c0_i32_0 : i32, i32, i32, i32
  }
  func.func @transform_3(%arg0: i32, %arg1: i32) -> (i32, i32, i32) {
    %c0_i32 = arith.constant 0 : i32
    %c0_i32_0 = arith.constant 0 : i32
    %c0_i32_1 = arith.constant 0 : i32
    %c0_i32_2 = arith.constant 0 : i32
    return %c0_i32, %c0_i32_0, %c0_i32_1 : i32, i32, i32
  }
  func.func @transform_4(%arg0: i32, %arg1: i32) -> (i32, i32, i32) {
    %c0_i32 = arith.constant 0 : i32
    %c0_i32_0 = arith.constant 0 : i32
    %c0_i32_1 = arith.constant 0 : i32
    %c0_i32_2 = arith.constant 0 : i32
    return %c0_i32, %c0_i32_0, %c0_i32_1 : i32, i32, i32
  }
  func.func @transform_5(%arg0: i32, %arg1: i32) -> (i32, i32, i32, i32) {
    %c0_i32 = arith.constant 0 : i32
    %c0_i32_0 = arith.constant 0 : i32
    %c0_i32_1 = arith.constant 0 : i32
    %c0_i32_2 = arith.constant 0 : i32
    %c0_i32_3 = arith.constant 0 : i32
    return %c0_i32, %c0_i32_0, %c0_i32_1, %c0_i32_2 : i32, i32, i32, i32
  }
  func.func @transform_6(%arg0: i32, %arg1: i32) -> (i32, i32) {
    %c0_i32 = arith.constant 0 : i32
    %c0_i32_0 = arith.constant 0 : i32
    %c0_i32_1 = arith.constant 0 : i32
    return %c0_i32, %c0_i32_0 : i32, i32
  }
  func.func @transform_7(%arg0: i32, %arg1: i32) -> (i32, i32, i32, i32, i32) {
    %c0_i32 = arith.constant 0 : i32
    %c0_i32_0 = arith.constant 0 : i32
    %c0_i32_1 = arith.constant 0 : i32
    %c0_i32_2 = arith.constant 0 : i32
    return %arg0, %arg1, %c0_i32, %c0_i32_0, %c0_i32_1 : i32, i32, i32, i32, i32
  }
}

</mosaic_0001>

<llo_original>
// kernel: tpu_custom_call.1
$region0: #{tpu_custom_call.1}
  #allocation0 [shape = 'u32[]', space=smem, size = 0x4, offset = 0x4, fixed_abs, tag = 'smem constant byte address 0x4 - core index']
  #allocation1 [shape = 'u32[72,128]{1,0:T(1,128)}', space=vmem, size = 0x9000, scoped, tag = 'internal scratch']
  #allocation2 [shape = 'f32[2,10,8,32]{3,2,1,0:T(8,128)}', space=vmem, size = 0x14000, scoped, tag = 'scratch operand']
  %s0 = inlined_call_operand.hbm [shape: f32[2,8,8,16], index: 0, kind: input, shape index: {}]
  %s1 = inlined_call_operand.hbm [shape: f32[2,8,8,16], index: 1, kind: input, shape index: {}]
  %s2 = inlined_call_operand.hbm [shape: f32[2,8,8,16], index: 2, kind: input, shape index: {}]
  %s3 = inlined_call_operand.hbm [shape: f32[4,16,32], index: 3, kind: input, shape index: {}]
  %s4 = inlined_call_operand.hbm [shape: f32[4,1,32], index: 4, kind: input, shape index: {}]
  %s5 = inlined_call_operand.hbm [shape: f32[3,3,32,32], index: 5, kind: input, shape index: {}]
  %s6 = inlined_call_operand.vmem [shape: f32[1,32], index: 6, kind: input, shape index: {}]
  %s7 = inlined_call_operand.hbm [shape: f32[2,8,2,8,32], index: 7, kind: output, shape index: {}]
  %s8 = sld [smem:[#allocation0]]
  $region85: #{tpu_custom_call.1} parent=0
    _
  %s10 = ssub.s32 1, %s8
  %s11 = scalar_select 0, %s10, %s8
  $region1: #{tpu_custom_call.1} parent=0
    #allocation3 [shape = 'u8[8192]{0}', space=vmem, size = 0x2000, scoped, tag = 'input window, operand 0']
    #allocation4 [shape = 's32[2]{0}', space=sflag, size = 0x8, scoped, tag = 'scoped memory for tpu_custom_call.1']
    #allocation5 [shape = 's32[2]{0}', space=sflag, size = 0x8, scoped, tag = 'scoped memory for tpu_custom_call.1']
    #allocation6 [shape = 'u8[65536]{0}', space=vmem, size = 0x10000, scoped, tag = 'input window, operand 1']
    #allocation7 [shape = 's32[2]{0}', space=sflag, size = 0x8, scoped, tag = 'scoped memory for tpu_custom_call.1']
    #allocation8 [shape = 'u8[8192]{0}', space=vmem, size = 0x2000, scoped, tag = 'input window, operand 2']
    #allocation9 [shape = 'u8[32768]{0}', space=vmem, size = 0x8000, scoped, tag = 'input window, operand 3, single buffered']
    #allocation10 [shape = 's32[1]{0}', space=sflag, size = 0x4, scoped, tag = 'scoped memory for tpu_custom_call.1']
    #allocation11 [shape = 'u8[2048]{0}', space=vmem, size = 0x800, scoped, tag = 'input window, operand 4, single buffered']
    #allocation12 [shape = 'u8[147456]{0}', space=vmem, size = 0x24000, scoped, tag = 'input window, operand 5, single buffered']
    #allocation13 [shape = 's32[1]{0}', space=sflag, size = 0x4, scoped, tag = 'scoped memory for tpu_custom_call.1']
    #allocation14 [shape = 'u8[131072]{0}', space=vmem, size = 0x20000, scoped, tag = 'output window, operand 0']
    %12 = vsyncpa [#allocation4], 0
    %s13 = scalar_lea.sflag [#allocation4], 1
    %14 = vsyncpa %s13, 0
    %15 = vsyncpa [#allocation7], 0
    %s16 = scalar_lea.sflag [#allocation7], 1
    %17 = vsyncpa %s16, 0
    %18 = vsyncpa [#allocation10], 0
    %19 = vsyncpa [#allocation13], 0
    %20 = vsyncpa [#allocation5], 0
    %s21 = scalar_lea.sflag [#allocation5], 1
    %22 = vsyncpa %s21, 0
    loop: start=0, step=1, limit=4
    $region2: #{tpu_custom_call.1} parent=1 // loop_pre_header
      _
    $region3: #{tpu_custom_call.1} parent=1 // loop_header
      %s24 = sphi 0, %s28
      %p25 = scmp.ge.s32.totalorder %s24, 4
      %s31 = sphi 0, %s43
      %s32 = sphi 0, %s39
      %s33 = sphi 0, %s31
      %s34 = sphi 0, %s32
      %s35 = sphi 0, %s33
      %s36 = sphi 0, %s34
      %s56 = sphi 0, %s58
      %s59 = sphi 0, %s56
      %s60 = sphi 0, %s59
      %s76 = sphi 0, %s60
      %s84 = sphi 0, %s86
      %s87 = sphi 0, %s84
      %s88 = sphi 0, %s87
      %s104 = sphi 0, %s88
      %s120 = sphi 0, %s122
      %s123 = sphi 0, %s120
      %s124 = sphi 0, %s123
      %s140 = sphi 0, %s124
      %s144 = sphi 0, %s144
      %s146 = sphi 0, %s144
      %s147 = sphi 0, %s146
      %s161 = sphi 0, %s147
      %s165 = sphi 0, %s165
      %s167 = sphi 0, %s165
      %s168 = sphi 0, %s167
      %s182 = sphi 0, %s168
      %s186 = sphi 0, %s186
      %s188 = sphi 0, %s186
      %s189 = sphi 0, %s188
      %s203 = sphi 0, %s189
      %s207 = sphi 0, %s207
      %s209 = sphi 0, %s207
      %s210 = sphi 0, %s209
      %s224 = sphi 0, %s210
      %s232 = sphi 0, %s234
      %s235 = sphi 0, %s232
      %s236 = sphi 0, %s235
      %s252 = sphi 0, %s236
    $region4: #{tpu_custom_call.1} parent=1 // loop_header_branch
      %27 = sbr.rel (%p25) target = $region8
    $region5: #{tpu_custom_call.1} parent=1 // loop_body
      %s29 = ssub.s32 %s24, 1
      %s30 = ssub.s32 %s24, 2
      %s37 = sadd.s32 1, %s32
      %p38 = scmp.ge.s32.totalorder %s37, 1
      %s39 = scalar_select %p38, 0, %s37
      %s40 = sadd.s32 1, %s31
      %s41 = scalar_select %p38, %s40, %s31
      %p42 = scmp.ge.s32.totalorder %s41, 2
      %s43 = scalar_select %p42, 0, %s41
      %s44 = smul.u32 %s32, 8
      %s45 = ssub.s32 %s44, 1
      %p46 = scmp.gt.s32.totalorder %s45, 0
      %s47 = scalar_select %p46, %s45, 0
      %s48 = smul.u32 %s39, 8
      %s49 = ssub.s32 %s48, 1
      %p50 = scmp.gt.s32.totalorder %s49, 0
      %s51 = scalar_select %p50, %s49, 0
      %s52 = ssub.s32 %s31, %s43
      %s53 = ssub.s32 %s47, %s51
      %s54 = sor.u32 %s52, %s53
      %p55 = scmp.eq.s32.totalorder %s54, 0
      %s57 = sadd.s32 %s56, 1
      %s58 = scalar_select %p55, %s56, %s57
      %p61 = pneg %p55
      %p62 = scmp.eq.s32.totalorder %s24, 1
      %p63 = por %p61, %p62
      %p64 = scmp.ne.s32.totalorder %s56, %s59
      %p65 = scmp.eq.s32.totalorder %s24, 0
      %p66 = por %p64, %p65
      %p67 = scmp.ne.s32.totalorder %s56, %s59
      %p68 = scmp.eq.s32.totalorder %s29, 1
      %p69 = por %p67, %p68
      %p70 = scmp.ne.s32.totalorder %s59, %s60
      %p71 = scmp.eq.s32.totalorder %s29, 0
      %p72 = por %p70, %p71
      %p73 = scmp.ne.s32.totalorder %s59, %s60
      %p74 = scmp.eq.s32.totalorder %s30, 1
      %p75 = por %p73, %p74
      %p77 = scmp.ne.s32.totalorder %s60, %s76
      %p78 = scmp.eq.s32.totalorder %s30, 0
      %p79 = por %p77, %p78
      %s80 = ssub.s32 %s31, %s43
      %s81 = ssub.s32 %s32, %s39
      %s82 = sor.u32 %s80, %s81
      %p83 = scmp.eq.s32.totalorder %s82, 0
      %s85 = sadd.s32 %s84, 1
      %s86 = scalar_select %p83, %s84, %s85
      %p89 = pneg %p83
      %p90 = scmp.eq.s32.totalorder %s24, 1
      %p91 = por %p89, %p90
      %p92 = scmp.ne.s32.totalorder %s84, %s87
      %p93 = scmp.eq.s32.totalorder %s24, 0
      %p94 = por %p92, %p93
      %p95 = scmp.ne.s32.totalorder %s84, %s87
      %p96 = scmp.eq.s32.totalorder %s29, 1
      %p97 = por %p95, %p96
      %p98 = scmp.ne.s32.totalorder %s87, %s88
      %p99 = scmp.eq.s32.totalorder %s29, 0
      %p100 = por %p98, %p99
      %p101 = scmp.ne.s32.totalorder %s87, %s88
      %p102 = scmp.eq.s32.totalorder %s30, 1
      %p103 = por %p101, %p102
      %p105 = scmp.ne.s32.totalorder %s88, %s104
      %p106 = scmp.eq.s32.totalorder %s30, 0
      %p107 = por %p105, %p106
      %s108 = sadd.s32 %s32, 1
      %s109 = smul.u32 %s108, 8
      %p110 = scmp.lt.s32.totalorder %s109, 7
      %s111 = scalar_select %p110, %s109, 7
      %s112 = sadd.s32 %s39, 1
      %s113 = smul.u32 %s112, 8
      %p114 = scmp.lt.s32.totalorder %s113, 7
      %s115 = scalar_select %p114, %s113, 7
      %s116 = ssub.s32 %s31, %s43
      %s117 = ssub.s32 %s111, %s115
      %s118 = sor.u32 %s116, %s117
      %p119 = scmp.eq.s32.totalorder %s118, 0
      %s121 = sadd.s32 %s120, 1
      %s122 = scalar_select %p119, %s120, %s121
      %p125 = pneg %p119
      %p126 = scmp.eq.s32.totalorder %s24, 1
      %p127 = por %p125, %p126
      %p128 = scmp.ne.s32.totalorder %s120, %s123
      %p129 = scmp.eq.s32.totalorder %s24, 0
      %p130 = por %p128, %p129
      %p131 = scmp.ne.s32.totalorder %s120, %s123
      %p132 = scmp.eq.s32.totalorder %s29, 1
      %p133 = por %p131, %p132
      %p134 = scmp.ne.s32.totalorder %s123, %s124
      %p135 = scmp.eq.s32.totalorder %s29, 0
      %p136 = por %p134, %p135
      %p137 = scmp.ne.s32.totalorder %s123, %s124
      %p138 = scmp.eq.s32.totalorder %s30, 1
      %p139 = por %p137, %p138
      %p141 = scmp.ne.s32.totalorder %s124, %s140
      %p142 = scmp.eq.s32.totalorder %s30, 0
      %p143 = por %p141, %p142
      %s145 = sadd.s32 %s144, 1
      %p148 = scmp.eq.s32.totalorder %s24, 1
      %p149 = scmp.ne.s32.totalorder %s144, %s146
      %p150 = scmp.eq.s32.totalorder %s24, 0
      %p151 = por %p149, %p150
      %p152 = scmp.ne.s32.totalorder %s144, %s146
      %p153 = scmp.eq.s32.totalorder %s29, 1
      %p154 = por %p152, %p153
      %p155 = scmp.ne.s32.totalorder %s146, %s147
      %p156 = scmp.eq.s32.totalorder %s29, 0
      %p157 = por %p155, %p156
      %p158 = scmp.ne.s32.totalorder %s146, %s147
      %p159 = scmp.eq.s32.totalorder %s30, 1
      %p160 = por %p158, %p159
      %p162 = scmp.ne.s32.totalorder %s147, %s161
      %p163 = scmp.eq.s32.totalorder %s30, 0
      %p164 = por %p162, %p163
      %s166 = sadd.s32 %s165, 1
      %p169 = scmp.eq.s32.totalorder %s24, 1
      %p170 = scmp.ne.s32.totalorder %s165, %s167
      %p171 = scmp.eq.s32.totalorder %s24, 0
      %p172 = por %p170, %p171
      %p173 = scmp.ne.s32.totalorder %s165, %s167
      %p174 = scmp.eq.s32.totalorder %s29, 1
      %p175 = por %p173, %p174
      %p176 = scmp.ne.s32.totalorder %s167, %s168
      %p177 = scmp.eq.s32.totalorder %s29, 0
      %p178 = por %p176, %p177
      %p179 = scmp.ne.s32.totalorder %s167, %s168
      %p180 = scmp.eq.s32.totalorder %s30, 1
      %p181 = por %p179, %p180
      %p183 = scmp.ne.s32.totalorder %s168, %s182
      %p184 = scmp.eq.s32.totalorder %s30, 0
      %p185 = por %p183, %p184
      %s187 = sadd.s32 %s186, 1
      %p190 = scmp.eq.s32.totalorder %s24, 1
      %p191 = scmp.ne.s32.totalorder %s186, %s188
      %p192 = scmp.eq.s32.totalorder %s24, 0
      %p193 = por %p191, %p192
      %p194 = scmp.ne.s32.totalorder %s186, %s188
      %p195 = scmp.eq.s32.totalorder %s29, 1
      %p196 = por %p194, %p195
      %p197 = scmp.ne.s32.totalorder %s188, %s189
      %p198 = scmp.eq.s32.totalorder %s29, 0
      %p199 = por %p197, %p198
      %p200 = scmp.ne.s32.totalorder %s188, %s189
      %p201 = scmp.eq.s32.totalorder %s30, 1
      %p202 = por %p200, %p201
      %p204 = scmp.ne.s32.totalorder %s189, %s203
      %p205 = scmp.eq.s32.totalorder %s30, 0
      %p206 = por %p204, %p205
      %s208 = sadd.s32 %s207, 1
      %p211 = scmp.eq.s32.totalorder %s24, 1
      %p212 = scmp.ne.s32.totalorder %s207, %s209
      %p213 = scmp.eq.s32.totalorder %s24, 0
      %p214 = por %p212, %p213
      %p215 = scmp.ne.s32.totalorder %s207, %s209
      %p216 = scmp.eq.s32.totalorder %s29, 1
      %p217 = por %p215, %p216
      %p218 = scmp.ne.s32.totalorder %s209, %s210
      %p219 = scmp.eq.s32.totalorder %s29, 0
      %p220 = por %p218, %p219
      %p221 = scmp.ne.s32.totalorder %s209, %s210
      %p222 = scmp.eq.s32.totalorder %s30, 1
      %p223 = por %p221, %p222
      %p225 = scmp.ne.s32.totalorder %s210, %s224
      %p226 = scmp.eq.s32.totalorder %s30, 0
      %p227 = por %p225, %p226
      %s228 = ssub.s32 %s31, %s43
      %s229 = ssub.s32 %s32, %s39
      %s230 = sor.u32 %s228, %s229
      %p231 = scmp.eq.s32.totalorder %s230, 0
      %s233 = sadd.s32 %s232, 1
      %s234 = scalar_select %p231, %s232, %s233
      %p237 = pneg %p231
      %p238 = scmp.eq.s32.totalorder %s24, 1
      %p239 = por %p237, %p238
      %p240 = scmp.ne.s32.totalorder %s232, %s235
      %p241 = scmp.eq.s32.totalorder %s24, 0
      %p242 = por %p240, %p241
      %p243 = scmp.ne.s32.totalorder %s232, %s235
      %p244 = scmp.eq.s32.totalorder %s29, 1
      %p245 = por %p243, %p244
      %p246 = scmp.ne.s32.totalorder %s235, %s236
      %p247 = scmp.eq.s32.totalorder %s29, 0
      %p248 = por %p246, %p247
      %p249 = scmp.ne.s32.totalorder %s235, %s236
      %p250 = scmp.eq.s32.totalorder %s30, 1
      %p251 = por %p249, %p250
      %p253 = scmp.ne.s32.totalorder %s236, %s252
      %p254 = scmp.eq.s32.totalorder %s30, 0
      %p255 = por %p253, %p254
      %p256 = scmp.le.s32.totalorder 1, %s24
      %p257 = scmp.lt.s32.totalorder %s24, 3
      %p258 = pnand %p256, %p257
      %p259 = pneg %p258
      // Predicated region
      $region9: #{tpu_custom_call.1} parent=5 // pred_check
        _
      $region10: #{tpu_custom_call.1} parent=5 // pred_check_branch
        %261 = sbr.rel (%p258) target = $region12
      $region11: #{tpu_custom_call.1} parent=5 // pred_region
        %s262 = ssub.s32 %s24, 1
        // Predicated region
        $region13: #{tpu_custom_call.1} parent=11 // pred_check
          %p263 = pneg %p157
        $region14: #{tpu_custom_call.1} parent=11 // pred_check_branch
          %265 = sbr.rel (%p263) target = $region16
        $region15: #{tpu_custom_call.1} parent=11 // pred_region
          %267 = vsyncadd [#allocation10], 0
          %s268 = sshll.u32 %s3, 4
          %s269 = int_to_ptr.hbm [resolvable:$true] %s268
          %s270 = sshll.u32 [#allocation9], 4
          %s271 = int_to_ptr.vmem [resolvable:$true] %s270
          %276 = dma.hbm_to_vmem [thread:$0]  %s269, 1024, %s271, [#allocation10], 128, 128, 8
        $region16: #{tpu_custom_call.1} parent=11 // pred_fallthru
          _
        // Predicated region
        $region17: #{tpu_custom_call.1} parent=11 // pred_check
          %p277 = pneg %p178
        $region18: #{tpu_custom_call.1} parent=11 // pred_check_branch
          %279 = sbr.rel (%p277) target = $region20
        $region19: #{tpu_custom_call.1} parent=11 // pred_region
          %281 = vsyncadd [#allocation10], 0
          %s282 = sshll.u32 %s4, 4
          %s283 = int_to_ptr.hbm [resolvable:$true] %s282
          %s284 = sshll.u32 [#allocation11], 4
          %s285 = int_to_ptr.vmem [resolvable:$true] %s284
          %290 = dma.hbm_to_vmem [thread:$0]  %s283, 64, %s285, [#allocation10], 16, 16, 1
        $region20: #{tpu_custom_call.1} parent=11 // pred_fallthru
          _
        // Predicated region
        $region21: #{tpu_custom_call.1} parent=11 // pred_check
          %p291 = pneg %p199
        $region22: #{tpu_custom_call.1} parent=11 // pred_check_branch
          %293 = sbr.rel (%p291) target = $region24
        $region23: #{tpu_custom_call.1} parent=11 // pred_region
          %295 = vsyncadd [#allocation13], 0
          %s296 = sshll.u32 %s5, 4
          %s297 = int_to_ptr.hbm [resolvable:$true] %s296
          %s298 = sshll.u32 [#allocation12], 4
          %s299 = int_to_ptr.vmem [resolvable:$true] %s298
          %304 = dma.hbm_to_vmem [thread:$0]  %s297, 4608, %s299, [#allocation13], 128, 128, 8
        $region24: #{tpu_custom_call.1} parent=11 // pred_fallthru
          _
        // Predicated region
        $region25: #{tpu_custom_call.1} parent=11 // pred_check
          %p305 = pneg %p220
        $region26: #{tpu_custom_call.1} parent=11 // pred_check_branch
          %307 = sbr.rel (%p305) target = $region28
        $region27: #{tpu_custom_call.1} parent=11 // pred_region
          _
        $region28: #{tpu_custom_call.1} parent=11 // pred_fallthru
          _
      $region12: #{tpu_custom_call.1} parent=5 // pred_fallthru
        _
      %p308 = scmp.lt.s32.totalorder %s24, 2
      // Predicated region
      $region29: #{tpu_custom_call.1} parent=5 // pred_check
        %p309 = pneg %p308
      $region30: #{tpu_custom_call.1} parent=5 // pred_check_branch
        %311 = sbr.rel (%p309) target = $region32
      $region31: #{tpu_custom_call.1} parent=5 // pred_region
        // Predicated region
        $region33: #{tpu_custom_call.1} parent=31 // pred_check
          %p312 = pneg %p66
        $region34: #{tpu_custom_call.1} parent=31 // pred_check_branch
          %314 = sbr.rel (%p312) target = $region36
        $region35: #{tpu_custom_call.1} parent=31 // pred_region
          %s315 = sand.u32 %s56, 1
          %s316 = scalar_lea.sflag [#allocation4], %s315
          %s317 = sand.u32 %s56, 1
          %s318 = smul.addr %s317, 8
          %s319 = scalar_lea.vmem [#allocation3], %s318
          %s320 = smul.u32 %s32, 8
          %s321 = ssub.s32 %s320, 1
          %p322 = scmp.gt.s32.totalorder %s321, 0
          %s323 = scalar_select %p322, %s321, 0
          %325 = vsyncadd %s316, 0
          %s326 = smul.addr %s31, 8
          %s327 = sadd.s32 %s323, %s326
          %s328 = smul.addr %s327, 8
          %s329 = scalar_lea.hbm %s0, %s328
          %s331 = sshll.u32 %s329, 4
          %s332 = int_to_ptr.hbm [resolvable:$true] %s331
          %s333 = sshll.u32 %s319, 4
          %s334 = int_to_ptr.vmem [resolvable:$true] %s333
          %336 = dma.hbm_to_vmem [thread:$0]  %s332, 128, %s334, %s316
        $region36: #{tpu_custom_call.1} parent=31 // pred_fallthru
          _
        // Predicated region
        $region37: #{tpu_custom_call.1} parent=31 // pred_check
          %p337 = pneg %p94
        $region38: #{tpu_custom_call.1} parent=31 // pred_check_branch
          %339 = sbr.rel (%p337) target = $region40
        $region39: #{tpu_custom_call.1} parent=31 // pred_region
          %s340 = sand.u32 %s24, 1
          %s341 = scalar_lea.sflag [#allocation7], %s340
          %s342 = sand.u32 %s84, 1
          %s343 = smul.addr %s342, 64
          %s344 = scalar_lea.vmem [#allocation6], %s343
          %s345 = smul.u32 8, %s32
          %347 = vsyncadd %s341, 0
          %s348 = smul.addr %s31, 8
          %s349 = sadd.s32 %s345, %s348
          %s350 = smul.addr %s349, 8
          %s351 = scalar_lea.hbm %s1, %s350
          %s352 = sshll.u32 %s351, 4
          %s353 = int_to_ptr.hbm [resolvable:$true] %s352
          %s354 = sshll.u32 %s344, 4
          %s355 = int_to_ptr.vmem [resolvable:$true] %s354
          %360 = dma.hbm_to_vmem [thread:$0]  %s353, 1024, %s355, %s341, 128, 128, 8
        $region40: #{tpu_custom_call.1} parent=31 // pred_fallthru
          _
        // Predicated region
        $region41: #{tpu_custom_call.1} parent=31 // pred_check
          %p361 = pneg %p130
        $region42: #{tpu_custom_call.1} parent=31 // pred_check_branch
          %363 = sbr.rel (%p361) target = $region44
        $region43: #{tpu_custom_call.1} parent=31 // pred_region
          %s364 = sand.u32 %s24, 1
          %s365 = scalar_lea.sflag [#allocation7], %s364
          %s366 = sand.u32 %s120, 1
          %s367 = smul.addr %s366, 8
          %s368 = scalar_lea.vmem [#allocation8], %s367
          %s369 = sadd.s32 %s32, 1
          %s370 = smul.u32 %s369, 8
          %p371 = scmp.lt.s32.totalorder %s370, 7
          %s372 = scalar_select %p371, %s370, 7
          %374 = vsyncadd %s365, 0
          %s375 = smul.addr %s31, 8
          %s376 = sadd.s32 %s372, %s375
          %s377 = smul.addr %s376, 8
          %s378 = scalar_lea.hbm %s2, %s377
          %s380 = sshll.u32 %s378, 4
          %s381 = int_to_ptr.hbm [resolvable:$true] %s380
          %s382 = sshll.u32 %s368, 4
          %s383 = int_to_ptr.vmem [resolvable:$true] %s382
          %385 = dma.hbm_to_vmem [thread:$0]  %s381, 128, %s383, %s365
        $region44: #{tpu_custom_call.1} parent=31 // pred_fallthru
          _
      $region32: #{tpu_custom_call.1} parent=5 // pred_fallthru
        _
      %p386 = scmp.le.s32.totalorder 1, %s24
      %p387 = scmp.lt.s32.totalorder %s24, 3
      %p388 = pnand %p386, %p387
      %p389 = pneg %p388
      // Predicated region
      $region45: #{tpu_custom_call.1} parent=5 // pred_check
        _
      $region46: #{tpu_custom_call.1} parent=5 // pred_check_branch
        %391 = sbr.rel (%p388) target = $region48
      $region47: #{tpu_custom_call.1} parent=5 // pred_region
        %s392 = ssub.s32 %s24, 1
        %s393 = sand.u32 %s59, 1
        %s394 = scalar_lea.sflag [#allocation4], %s393
        %s395 = sand.u32 %s59, 1
        %s396 = smul.addr %s395, 8
        %s397 = scalar_lea.vmem [#allocation3], %s396
        // Predicated region
        $region49: #{tpu_custom_call.1} parent=47 // pred_check
          %p398 = pneg %p72
        $region50: #{tpu_custom_call.1} parent=47 // pred_check_branch
          %400 = sbr.rel (%p398) target = $region52
        $region51: #{tpu_custom_call.1} parent=47 // pred_region
          %402 = dma.done %s394, 128
        $region52: #{tpu_custom_call.1} parent=47 // pred_fallthru
          _
        %s403 = sand.u32 %s29, 1
        %s404 = scalar_lea.sflag [#allocation7], %s403
        %s405 = sand.u32 %s87, 1
        %s406 = smul.addr %s405, 64
        %s407 = scalar_lea.vmem [#allocation6], %s406
        // Predicated region
        $region53: #{tpu_custom_call.1} parent=47 // pred_check
          %p408 = pneg %p100
        $region54: #{tpu_custom_call.1} parent=47 // pred_check_branch
          %410 = sbr.rel (%p408) target = $region56
        $region55: #{tpu_custom_call.1} parent=47 // pred_region
          %412 = dma.done %s404, 1024
        $region56: #{tpu_custom_call.1} parent=47 // pred_fallthru
          _
        %s413 = sand.u32 %s29, 1
        %s414 = scalar_lea.sflag [#allocation7], %s413
        %s415 = sand.u32 %s123, 1
        %s416 = smul.addr %s415, 8
        %s417 = scalar_lea.vmem [#allocation8], %s416
        // Predicated region
        $region57: #{tpu_custom_call.1} parent=47 // pred_check
          %p418 = pneg %p136
        $region58: #{tpu_custom_call.1} parent=47 // pred_check_branch
          %420 = sbr.rel (%p418) target = $region60
        $region59: #{tpu_custom_call.1} parent=47 // pred_region
          %422 = dma.done %s414, 128
        $region60: #{tpu_custom_call.1} parent=47 // pred_fallthru
          _
        // Predicated region
        $region61: #{tpu_custom_call.1} parent=47 // pred_check
          %p423 = pneg %p157
        $region62: #{tpu_custom_call.1} parent=47 // pred_check_branch
          %425 = sbr.rel (%p423) target = $region64
        $region63: #{tpu_custom_call.1} parent=47 // pred_region
          %427 = dma.done [#allocation10], 1024
        $region64: #{tpu_custom_call.1} parent=47 // pred_fallthru
          _
        // Predicated region
        $region65: #{tpu_custom_call.1} parent=47 // pred_check
          %p428 = pneg %p178
        $region66: #{tpu_custom_call.1} parent=47 // pred_check_branch
          %430 = sbr.rel (%p428) target = $region68
        $region67: #{tpu_custom_call.1} parent=47 // pred_region
          %432 = dma.done [#allocation10], 64
        $region68: #{tpu_custom_call.1} parent=47 // pred_fallthru
          _
        // Predicated region
        $region69: #{tpu_custom_call.1} parent=47 // pred_check
          %p433 = pneg %p199
        $region70: #{tpu_custom_call.1} parent=47 // pred_check_branch
          %435 = sbr.rel (%p433) target = $region72
        $region71: #{tpu_custom_call.1} parent=47 // pred_region
          %437 = dma.done [#allocation13], 4608
        $region72: #{tpu_custom_call.1} parent=47 // pred_fallthru
          _
        %s438 = sand.u32 %s59, 1
        %s439 = scalar_lea.sflag [#allocation4], %s438
        %s440 = sand.u32 %s59, 1
        %s441 = smul.addr %s440, 8
        %s442 = scalar_lea.vmem [#allocation3], %s441
        %p443 = pneg %p72
        %p444 = pneg %p69
        %s445 = sand.u32 %s29, 1
        %s446 = scalar_lea.sflag [#allocation7], %s445
        %s447 = sand.u32 %s87, 1
        %s448 = smul.addr %s447, 64
        %s449 = scalar_lea.vmem [#allocation6], %s448
        %p450 = pneg %p100
        %p451 = pneg %p97
        %s452 = sand.u32 %s29, 1
        %s453 = scalar_lea.sflag [#allocation7], %s452
        %s454 = sand.u32 %s123, 1
        %s455 = smul.addr %s454, 8
        %s456 = scalar_lea.vmem [#allocation8], %s455
        %p457 = pneg %p136
        %p458 = pneg %p133
        %p459 = pneg %p157
        %p460 = pneg %p154
        %p461 = pneg %p178
        %p462 = pneg %p175
        %p463 = pneg %p199
        %p464 = pneg %p196
        %p465 = pneg %p220
        %p466 = pneg %p217
        %p467 = pneg %p248
        %p468 = pneg %p245
        %s469 = sand.u32 %s235, 1
        %s470 = scalar_lea.sflag [#allocation5], %s469
        %s471 = sand.u32 %s235, 1
        %s472 = smul.addr %s471, 128
        %s473 = scalar_lea.vmem [#allocation14], %s472
        %s474 = smul.u32 %s34, 8
        %s475 = ssub.s32 %s474, 1
        %p476 = scmp.gt.s32.totalorder %s475, 0
        %s477 = scalar_select %p476, %s475, 0
        %s478 = smul.u32 8, %s34
        %s479 = sadd.s32 %s34, 1
        %s480 = smul.u32 %s479, 8
        %p481 = scmp.lt.s32.totalorder %s480, 7
        %s482 = scalar_select %p481, %s480, 7
        %s483 = smul.u32 8, %s34
        %v484 = vld [vmem:[%s407] sm:$0xff]
        %v485 = vld [vmem:[%s407 + $0x8] sm:$0xff]
        %v486 = vld [vmem:[%s407 + $0x10] sm:$0xff]
        %v487 = vld [vmem:[%s407 + $0x18] sm:$0xff]
        %v488 = vld [vmem:[%s407 + $0x20] sm:$0xff]
        %v489 = vld [vmem:[%s407 + $0x28] sm:$0xff]
        %v490 = vld [vmem:[%s407 + $0x30] sm:$0xff]
        %v491 = vld [vmem:[%s407 + $0x38] sm:$0xff]
        %v492 = vld [vmem:[#allocation9] sm:$0xff]
        %v493 = vld [vmem:[#allocation9 + $0x8] sm:$0xff]
        %v494 = vld [vmem:[#allocation11] sm:$0x1]
        %v496 = vperm.slane %v494, 0
        %vm498 = vcmask 130048
        %v500 = vsel %vm498, %v484, 0
        %v503 = vsel %vm498, %v485, 0
        %v506 = vsel %vm498, %v486, 0
        %v509 = vsel %vm498, %v487, 0
        %v512 = vsel %vm498, %v488, 0
        %v515 = vsel %vm498, %v489, 0
        %v518 = vsel %vm498, %v490, 0
        %v521 = vsel %vm498, %v491, 0
        %523 = vmatpush.msra.mxu0 0.0
        %524 = vmatpush.msra.mxu0 0.0
        %525 = vmatpush.msra.mxu0 0.0
        %526 = vmatpush.msra.mxu0 0.0
        %527 = vmatpush.msra.mxu0 0.0
        %528 = vmatpush.msra.mxu0 0.0
        %529 = vmatpush.msra.mxu0 0.0
        %530 = vmatpush.msra.mxu0 0.0
        %531 = vmatpush.msra.mxu0 0.0
        %532 = vmatpush.msra.mxu0 0.0
        %533 = vmatpush.msra.mxu0 0.0
        %534 = vmatpush.msra.mxu0 0.0
        %535 = vmatpush.msra.mxu0 0.0
        %536 = vmatpush.msra.mxu0 0.0
        %537 = vmatpush.msra.mxu0 %v493
        %538 = vmatpush.msra.mxu0 %v492
        %539 = vmatmul.f32.gmra.mxu0 %v500
        %v540 = vpop.f32.mrf.mxu0
        %v541 = vadd.f32 %v496, %v540
        %542 = vmatmul.f32.gmra.mxu0 %v503
        %v543 = vpop.f32.mrf.mxu0
        %v544 = vadd.f32 %v496, %v543
        %545 = vmatmul.f32.gmra.mxu0 %v506
        %v546 = vpop.f32.mrf.mxu0
        %v547 = vadd.f32 %v496, %v546
        %548 = vmatmul.f32.gmra.mxu0 %v509
        %v549 = vpop.f32.mrf.mxu0
        %v550 = vadd.f32 %v496, %v549
        %551 = vmatmul.f32.gmra.mxu0 %v512
        %v552 = vpop.f32.mrf.mxu0
        %v553 = vadd.f32 %v496, %v552
        %554 = vmatmul.f32.gmra.mxu0 %v515
        %v555 = vpop.f32.mrf.mxu0
        %v556 = vadd.f32 %v496, %v555
        %557 = vmatmul.f32.gmra.mxu0 %v518
        %v558 = vpop.f32.mrf.mxu0
        %v559 = vadd.f32 %v496, %v558
        %560 = vmatmul.f32.gmra.mxu0 %v521
        %v561 = vpop.f32.mrf.mxu0
        %v562 = vadd.f32 %v496, %v561
        %563 = vdwg.mxu0
        %vm564 = vcmp.ge.f32.partialorder %v541, 0.0
        %vm565 = vcmp.ge.f32.partialorder %v544, 0.0
        %vm566 = vcmp.ge.f32.partialorder %v547, 0.0
        %vm567 = vcmp.ge.f32.partialorder %v550, 0.0
        %vm568 = vcmp.ge.f32.partialorder %v553, 0.0
        %vm569 = vcmp.ge.f32.partialorder %v556, 0.0
        %vm570 = vcmp.ge.f32.partialorder %v559, 0.0
        %vm571 = vcmp.ge.f32.partialorder %v562, 0.0
        %v572 = vmul.f32 %v541, 0.01
        %v573 = vmul.f32 %v544, 0.01
        %v574 = vmul.f32 %v547, 0.01
        %v575 = vmul.f32 %v550, 0.01
        %v576 = vmul.f32 %v553, 0.01
        %v577 = vmul.f32 %v556, 0.01
        %v578 = vmul.f32 %v559, 0.01
        %v579 = vmul.f32 %v562, 0.01
        %v580 = vsel %vm564, %v541, %v572
        %v581 = vsel %vm565, %v544, %v573
        %v582 = vsel %vm566, %v547, %v574
        %v583 = vsel %vm567, %v550, %v575
        %v584 = vsel %vm568, %v553, %v576
        %v585 = vsel %vm569, %v556, %v577
        %v586 = vsel %vm570, %v559, %v578
        %v587 = vsel %vm571, %v562, %v579
        %s588 = scalar_lea.vmem [#allocation2], 8
        %vm589 = vcmask 261120
        %590 = vst.msk [vmem:[%s588] sm:$0xff] %vm589, %v580
        %591 = vst.msk [vmem:[%s588 + $0x8] sm:$0xff] %vm589, %v581
        %592 = vst.msk [vmem:[%s588 + $0x10] sm:$0xff] %vm589, %v582
        %593 = vst.msk [vmem:[%s588 + $0x18] sm:$0xff] %vm589, %v583
        %594 = vst.msk [vmem:[%s588 + $0x20] sm:$0xff] %vm589, %v584
        %595 = vst.msk [vmem:[%s588 + $0x28] sm:$0xff] %vm589, %v585
        %596 = vst.msk [vmem:[%s588 + $0x30] sm:$0xff] %vm589, %v586
        %597 = vst.msk [vmem:[%s588 + $0x38] sm:$0xff] %vm589, %v587
        %s598 = scalar_lea.vmem [#allocation9], 16
        %v599 = vld [vmem:[%s598] sm:$0xff]
        %v600 = vld [vmem:[%s598 + $0x8] sm:$0xff]
        %s601 = scalar_lea.vmem [#allocation11], 1
        %v602 = vld [vmem:[%s601] sm:$0x1]
        %v604 = vperm.slane %v602, 0
        %606 = vmatpush.msra.mxu0 0.0
        %607 = vmatpush.msra.mxu0 0.0
        %608 = vmatpush.msra.mxu0 0.0
        %609 = vmatpush.msra.mxu0 0.0
        %610 = vmatpush.msra.mxu0 0.0
        %611 = vmatpush.msra.mxu0 0.0
        %612 = vmatpush.msra.mxu0 0.0
        %613 = vmatpush.msra.mxu0 0.0
        %614 = vmatpush.msra.mxu0 0.0
        %615 = vmatpush.msra.mxu0 0.0
        %616 = vmatpush.msra.mxu0 0.0
        %617 = vmatpush.msra.mxu0 0.0
        %618 = vmatpush.msra.mxu0 0.0
        %619 = vmatpush.msra.mxu0 0.0
        %620 = vmatpush.msra.mxu0 %v600
        %621 = vmatpush.msra.mxu0 %v599
        %622 = vmatmul.f32.gmra.mxu0 %v500
        %v623 = vpop.f32.mrf.mxu0
        %v624 = vadd.f32 %v604, %v623
        %625 = vmatmul.f32.gmra.mxu0 %v503
        %v626 = vpop.f32.mrf.mxu0
        %v627 = vadd.f32 %v604, %v626
        %628 = vmatmul.f32.gmra.mxu0 %v506
        %v629 = vpop.f32.mrf.mxu0
        %v630 = vadd.f32 %v604, %v629
        %631 = vmatmul.f32.gmra.mxu0 %v509
        %v632 = vpop.f32.mrf.mxu0
        %v633 = vadd.f32 %v604, %v632
        %634 = vmatmul.f32.gmra.mxu0 %v512
        %v635 = vpop.f32.mrf.mxu0
        %v636 = vadd.f32 %v604, %v635
        %637 = vmatmul.f32.gmra.mxu0 %v515
        %v638 = vpop.f32.mrf.mxu0
        %v639 = vadd.f32 %v604, %v638
        %640 = vmatmul.f32.gmra.mxu0 %v518
        %v641 = vpop.f32.mrf.mxu0
        %v642 = vadd.f32 %v604, %v641
        %643 = vmatmul.f32.gmra.mxu0 %v521
        %v644 = vpop.f32.mrf.mxu0
        %v645 = vadd.f32 %v604, %v644
        %646 = vdwg.mxu0
        %vm647 = vcmp.ge.f32.partialorder %v624, 0.0
        %vm648 = vcmp.ge.f32.partialorder %v627, 0.0
        %vm649 = vcmp.ge.f32.partialorder %v630, 0.0
        %vm650 = vcmp.ge.f32.partialorder %v633, 0.0
        %vm651 = vcmp.ge.f32.partialorder %v636, 0.0
        %vm652 = vcmp.ge.f32.partialorder %v639, 0.0
        %vm653 = vcmp.ge.f32.partialorder %v642, 0.0
        %vm654 = vcmp.ge.f32.partialorder %v645, 0.0
        %v655 = vmul.f32 %v624, 0.01
        %v656 = vmul.f32 %v627, 0.01
        %v657 = vmul.f32 %v630, 0.01
        %v658 = vmul.f32 %v633, 0.01
        %v659 = vmul.f32 %v636, 0.01
        %v660 = vmul.f32 %v639, 0.01
        %v661 = vmul.f32 %v642, 0.01
        %v662 = vmul.f32 %v645, 0.01
        %v663 = vsel %vm647, %v624, %v655
        %v664 = vsel %vm648, %v627, %v656
        %v665 = vsel %vm649, %v630, %v657
        %v666 = vsel %vm650, %v633, %v658
        %v667 = vsel %vm651, %v636, %v659
        %v668 = vsel %vm652, %v639, %v660
        %v669 = vsel %vm653, %v642, %v661
        %v670 = vsel %vm654, %v645, %v662
        %s671 = scalar_lea.vmem [#allocation2], 88
        %672 = vst.msk [vmem:[%s671] sm:$0xff] %vm589, %v663
        %673 = vst.msk [vmem:[%s671 + $0x8] sm:$0xff] %vm589, %v664
        %674 = vst.msk [vmem:[%s671 + $0x10] sm:$0xff] %vm589, %v665
        %675 = vst.msk [vmem:[%s671 + $0x18] sm:$0xff] %vm589, %v666
        %676 = vst.msk [vmem:[%s671 + $0x20] sm:$0xff] %vm589, %v667
        %677 = vst.msk [vmem:[%s671 + $0x28] sm:$0xff] %vm589, %v668
        %678 = vst.msk [vmem:[%s671 + $0x30] sm:$0xff] %vm589, %v669
        %679 = vst.msk [vmem:[%s671 + $0x38] sm:$0xff] %vm589, %v670
        %p680 = scmp.gt.s32.totalorder %s34, 0
        %s681 = scalar_select %p680, 1, 0
        %s682 = scvt.s32.f32 %s681
        %v683 = vld [vmem:[%s397] sm:$0xff]
        %v684 = vld [vmem:[%s598] sm:$0xff]
        %v685 = vld [vmem:[%s598 + $0x8] sm:$0xff]
        %v686 = vld [vmem:[%s601] sm:$0x1]
        %v688 = vperm.slane %v686, 0
        %v691 = vsel %vm498, %v683, 0
        %693 = vmatpush.msra.mxu0 0.0
        %694 = vmatpush.msra.mxu0 0.0
        %695 = vmatpush.msra.mxu0 0.0
        %696 = vmatpush.msra.mxu0 0.0
        %697 = vmatpush.msra.mxu0 0.0
        %698 = vmatpush.msra.mxu0 0.0
        %699 = vmatpush.msra.mxu0 0.0
        %700 = vmatpush.msra.mxu0 0.0
        %701 = vmatpush.msra.mxu0 0.0
        %702 = vmatpush.msra.mxu0 0.0
        %703 = vmatpush.msra.mxu0 0.0
        %704 = vmatpush.msra.mxu0 0.0
        %705 = vmatpush.msra.mxu0 0.0
        %706 = vmatpush.msra.mxu0 0.0
        %707 = vmatpush.msra.mxu0 %v685
        %708 = vmatpush.msra.mxu0 %v684
        %709 = vmatmul.f32.gmra.mxu0 %v691
        %v710 = vpop.f32.mrf.mxu0
        %v711 = vadd.f32 %v688, %v710
        %712 = vdwg.mxu0
        %vm713 = vcmp.ge.f32.partialorder %v711, 0.0
        %v714 = vmul.f32 %v711, 0.01
        %v715 = vsel %vm713, %v711, %v714
        %v716 = vstv %s682
        %v717 = vmul.f32 %v715, %v716
        %s718 = scalar_lea.vmem [#allocation2], 80
        %719 = vst.msk [vmem:[%s718] sm:$0xff] %vm589, %v717
        %p720 = scmp.lt.s32.totalorder %s34, 0
        %s721 = scalar_select %p720, 1, 0
        %s722 = scvt.s32.f32 %s721
        %v723 = vld [vmem:[%s417] sm:$0xff]
        %v724 = vld [vmem:[#allocation9] sm:$0xff]
        %v725 = vld [vmem:[#allocation9 + $0x8] sm:$0xff]
        %v726 = vld [vmem:[#allocation11] sm:$0x1]
        %v728 = vperm.slane %v726, 0
        %v731 = vsel %vm498, %v723, 0
        %733 = vmatpush.msra.mxu0 0.0
        %734 = vmatpush.msra.mxu0 0.0
        %735 = vmatpush.msra.mxu0 0.0
        %736 = vmatpush.msra.mxu0 0.0
        %737 = vmatpush.msra.mxu0 0.0
        %738 = vmatpush.msra.mxu0 0.0
        %739 = vmatpush.msra.mxu0 0.0
        %740 = vmatpush.msra.mxu0 0.0
        %741 = vmatpush.msra.mxu0 0.0
        %742 = vmatpush.msra.mxu0 0.0
        %743 = vmatpush.msra.mxu0 0.0
        %744 = vmatpush.msra.mxu0 0.0
        %745 = vmatpush.msra.mxu0 0.0
        %746 = vmatpush.msra.mxu0 0.0
        %747 = vmatpush.msra.mxu0 %v725
        %748 = vmatpush.msra.mxu0 %v724
        %749 = vmatmul.f32.gmra.mxu0 %v731
        %v750 = vpop.f32.mrf.mxu0
        %v751 = vadd.f32 %v728, %v750
        %752 = vdwg.mxu0
        %vm753 = vcmp.ge.f32.partialorder %v751, 0.0
        %v754 = vmul.f32 %v751, 0.01
        %v755 = vsel %vm753, %v751, %v754
        %v756 = vstv %s722
        %v757 = vmul.f32 %v755, %v756
        %s758 = scalar_lea.vmem [#allocation2], 72
        %759 = vst.msk [vmem:[%s758] sm:$0xff] %vm589, %v757
        %v760 = vld [vmem:[%s6] sm:$0x1]
        %v762 = vperm.slane %v760, 0
        %v764 = vadd.f32 %v762, 0.0
        %v765 = vld [vmem:[%s718] sm:$0xff]
        %v766 = vld [vmem:[%s718 + $0x8] sm:$0xff]
        %v767 = vld [vmem:[%s718 + $0x10] sm:$0xff]
        %v768 = vld [vmem:[%s718 + $0x18] sm:$0xff]
        %v769 = vld [vmem:[%s718 + $0x20] sm:$0xff]
        %v770 = vld [vmem:[%s718 + $0x28] sm:$0xff]
        %v771 = vld [vmem:[%s718 + $0x30] sm:$0xff]
        %v772 = vld [vmem:[%s718 + $0x38] sm:$0xff]
        %v781 = vrot.slane %v765, 7
        %v782 = vrot.slane %v766, 7
        %v783 = vrot.slane %v767, 7
        %v784 = vrot.slane %v768, 7
        %v785 = vrot.slane %v769, 7
        %v786 = vrot.slane %v770, 7
        %v787 = vrot.slane %v771, 7
        %v788 = vrot.slane %v772, 7
        %vm797 = vcmask 1040384
        %v798 = vsel %vm797, 0.0, %v781
        %v799 = vsel %vm797, 0.0, %v782
        %v800 = vsel %vm797, 0.0, %v783
        %v801 = vsel %vm797, 0.0, %v784
        %v802 = vsel %vm797, 0.0, %v785
        %v803 = vsel %vm797, 0.0, %v786
        %v804 = vsel %vm797, 0.0, %v787
        %v805 = vsel %vm797, 0.0, %v788
        %v806 = vrot.slane %v765, 1
        %v807 = vrot.slane %v766, 1
        %v808 = vrot.slane %v767, 1
        %v809 = vrot.slane %v768, 1
        %v810 = vrot.slane %v769, 1
        %v811 = vrot.slane %v770, 1
        %v812 = vrot.slane %v771, 1
        %v813 = vrot.slane %v772, 1
        %vm822 = vcmask 1046528
        %v823 = vsel %vm822, %v806, 0.0
        %v824 = vsel %vm822, %v807, 0.0
        %v825 = vsel %vm822, %v808, 0.0
        %v826 = vsel %vm822, %v809, 0.0
        %v827 = vsel %vm822, %v810, 0.0
        %v828 = vsel %vm822, %v811, 0.0
        %v829 = vsel %vm822, %v812, 0.0
        %v830 = vsel %vm822, %v813, 0.0
        %v831 = vld [vmem:[#allocation12] sm:$0xff]
        %v832 = vld [vmem:[#allocation12 + $0x8] sm:$0xff]
        %v833 = vld [vmem:[#allocation12 + $0x10] sm:$0xff]
        %v834 = vld [vmem:[#allocation12 + $0x18] sm:$0xff]
        %v836 = vsel %vm589, %v798, 0
        %v839 = vsel %vm589, %v799, 0
        %v842 = vsel %vm589, %v800, 0
        %v845 = vsel %vm589, %v801, 0
        %v848 = vsel %vm589, %v802, 0
        %v851 = vsel %vm589, %v803, 0
        %v854 = vsel %vm589, %v804, 0
        %v857 = vsel %vm589, %v805, 0
        %859 = vmatpush.msra.mxu0 0.0
        %860 = vmatpush.msra.mxu0 0.0
        %861 = vmatpush.msra.mxu0 0.0
        %862 = vmatpush.msra.mxu0 0.0
        %863 = vmatpush.msra.mxu0 0.0
        %864 = vmatpush.msra.mxu0 0.0
        %865 = vmatpush.msra.mxu0 0.0
        %866 = vmatpush.msra.mxu0 0.0
        %867 = vmatpush.msra.mxu0 0.0
        %868 = vmatpush.msra.mxu0 0.0
        %869 = vmatpush.msra.mxu0 0.0
        %870 = vmatpush.msra.mxu0 0.0
        %871 = vmatpush.msra.mxu0 %v834
        %872 = vmatpush.msra.mxu0 %v833
        %873 = vmatpush.msra.mxu0 %v832
        %874 = vmatpush.msra.mxu0 %v831
        %875 = vmatmul.f32.gmra.mxu0 %v836
        %v876 = vpop.f32.mrf.mxu0
        %v877 = vadd.f32 0.0, %v876
        %878 = vmatmul.f32.gmra.mxu0 %v839
        %v879 = vpop.f32.mrf.mxu0
        %v880 = vadd.f32 0.0, %v879
        %881 = vmatmul.f32.gmra.mxu0 %v842
        %v882 = vpop.f32.mrf.mxu0
        %v883 = vadd.f32 0.0, %v882
        %884 = vmatmul.f32.gmra.mxu0 %v845
        %v885 = vpop.f32.mrf.mxu0
        %v886 = vadd.f32 0.0, %v885
        %887 = vmatmul.f32.gmra.mxu0 %v848
        %v888 = vpop.f32.mrf.mxu0
        %v889 = vadd.f32 0.0, %v888
        %890 = vmatmul.f32.gmra.mxu0 %v851
        %v891 = vpop.f32.mrf.mxu0
        %v892 = vadd.f32 0.0, %v891
        %893 = vmatmul.f32.gmra.mxu0 %v854
        %v894 = vpop.f32.mrf.mxu0
        %v895 = vadd.f32 0.0, %v894
        %896 = vmatmul.f32.gmra.mxu0 %v857
        %v897 = vpop.f32.mrf.mxu0
        %v898 = vadd.f32 0.0, %v897
        %899 = vdwg.mxu0
        %v900 = vadd.f32 %v764, %v877
        %v901 = vadd.f32 %v764, %v880
        %v902 = vadd.f32 %v764, %v883
        %v903 = vadd.f32 %v764, %v886
        %v904 = vadd.f32 %v764, %v889
        %v905 = vadd.f32 %v764, %v892
        %v906 = vadd.f32 %v764, %v895
        %v907 = vadd.f32 %v764, %v898
        %s908 = scalar_lea.vmem [#allocation12], 32
        %v909 = vld [vmem:[%s908] sm:$0xff]
        %v910 = vld [vmem:[%s908 + $0x8] sm:$0xff]
        %v911 = vld [vmem:[%s908 + $0x10] sm:$0xff]
        %v912 = vld [vmem:[%s908 + $0x18] sm:$0xff]
        %v913 = vsel %vm589, %v765, 0
        %v915 = vsel %vm589, %v766, 0
        %v917 = vsel %vm589, %v767, 0
        %v919 = vsel %vm589, %v768, 0
        %v921 = vsel %vm589, %v769, 0
        %v923 = vsel %vm589, %v770, 0
        %v925 = vsel %vm589, %v771, 0
        %v927 = vsel %vm589, %v772, 0
        %929 = vmatpush.msra.mxu0 0.0
        %930 = vmatpush.msra.mxu0 0.0
        %931 = vmatpush.msra.mxu0 0.0
        %932 = vmatpush.msra.mxu0 0.0
        %933 = vmatpush.msra.mxu0 0.0
        %934 = vmatpush.msra.mxu0 0.0
        %935 = vmatpush.msra.mxu0 0.0
        %936 = vmatpush.msra.mxu0 0.0
        %937 = vmatpush.msra.mxu0 0.0
        %938 = vmatpush.msra.mxu0 0.0
        %939 = vmatpush.msra.mxu0 0.0
        %940 = vmatpush.msra.mxu0 0.0
        %941 = vmatpush.msra.mxu0 %v912
        %942 = vmatpush.msra.mxu0 %v911
        %943 = vmatpush.msra.mxu0 %v910
        %944 = vmatpush.msra.mxu0 %v909
        %945 = vmatmul.f32.gmra.mxu0 %v913
        %v946 = vpop.f32.mrf.mxu0
        %v947 = vadd.f32 0.0, %v946
        %948 = vmatmul.f32.gmra.mxu0 %v915
        %v949 = vpop.f32.mrf.mxu0
        %v950 = vadd.f32 0.0, %v949
        %951 = vmatmul.f32.gmra.mxu0 %v917
        %v952 = vpop.f32.mrf.mxu0
        %v953 = vadd.f32 0.0, %v952
        %954 = vmatmul.f32.gmra.mxu0 %v919
        %v955 = vpop.f32.mrf.mxu0
        %v956 = vadd.f32 0.0, %v955
        %957 = vmatmul.f32.gmra.mxu0 %v921
        %v958 = vpop.f32.mrf.mxu0
        %v959 = vadd.f32 0.0, %v958
        %960 = vmatmul.f32.gmra.mxu0 %v923
        %v961 = vpop.f32.mrf.mxu0
        %v962 = vadd.f32 0.0, %v961
        %963 = vmatmul.f32.gmra.mxu0 %v925
        %v964 = vpop.f32.mrf.mxu0
        %v965 = vadd.f32 0.0, %v964
        %966 = vmatmul.f32.gmra.mxu0 %v927
        %v967 = vpop.f32.mrf.mxu0
        %v968 = vadd.f32 0.0, %v967
        %969 = vdwg.mxu0
        %v970 = vadd.f32 %v900, %v947
        %v971 = vadd.f32 %v901, %v950
        %v972 = vadd.f32 %v902, %v953
        %v973 = vadd.f32 %v903, %v956
        %v974 = vadd.f32 %v904, %v959
        %v975 = vadd.f32 %v905, %v962
        %v976 = vadd.f32 %v906, %v965
        %v977 = vadd.f32 %v907, %v968
        %s978 = scalar_lea.vmem [#allocation12], 64
        %v979 = vld [vmem:[%s978] sm:$0xff]
        %v980 = vld [vmem:[%s978 + $0x8] sm:$0xff]
        %v981 = vld [vmem:[%s978 + $0x10] sm:$0xff]
        %v982 = vld [vmem:[%s978 + $0x18] sm:$0xff]
        %v984 = vsel %vm589, %v823, 0
        %v987 = vsel %vm589, %v824, 0
        %v990 = vsel %vm589, %v825, 0
        %v993 = vsel %vm589, %v826, 0
        %v996 = vsel %vm589, %v827, 0
        %v999 = vsel %vm589, %v828, 0
        %v1002 = vsel %vm589, %v829, 0
        %v1005 = vsel %vm589, %v830, 0
        %1007 = vmatpush.msra.mxu0 0.0
        %1008 = vmatpush.msra.mxu0 0.0
        %1009 = vmatpush.msra.mxu0 0.0
        %1010 = vmatpush.msra.mxu0 0.0
        %1011 = vmatpush.msra.mxu0 0.0
        %1012 = vmatpush.msra.mxu0 0.0
        %1013 = vmatpush.msra.mxu0 0.0
        %1014 = vmatpush.msra.mxu0 0.0
        %1015 = vmatpush.msra.mxu0 0.0
        %1016 = vmatpush.msra.mxu0 0.0
        %1017 = vmatpush.msra.mxu0 0.0
        %1018 = vmatpush.msra.mxu0 0.0
        %1019 = vmatpush.msra.mxu0 %v982
        %1020 = vmatpush.msra.mxu0 %v981
        %1021 = vmatpush.msra.mxu0 %v980
        %1022 = vmatpush.msra.mxu0 %v979
        %1023 = vmatmul.f32.gmra.mxu0 %v984
        %v1024 = vpop.f32.mrf.mxu0
        %v1025 = vadd.f32 0.0, %v1024
        %1026 = vmatmul.f32.gmra.mxu0 %v987
        %v1027 = vpop.f32.mrf.mxu0
        %v1028 = vadd.f32 0.0, %v1027
        %1029 = vmatmul.f32.gmra.mxu0 %v990
        %v1030 = vpop.f32.mrf.mxu0
        %v1031 = vadd.f32 0.0, %v1030
        %1032 = vmatmul.f32.gmra.mxu0 %v993
        %v1033 = vpop.f32.mrf.mxu0
        %v1034 = vadd.f32 0.0, %v1033
        %1035 = vmatmul.f32.gmra.mxu0 %v996
        %v1036 = vpop.f32.mrf.mxu0
        %v1037 = vadd.f32 0.0, %v1036
        %1038 = vmatmul.f32.gmra.mxu0 %v999
        %v1039 = vpop.f32.mrf.mxu0
        %v1040 = vadd.f32 0.0, %v1039
        %1041 = vmatmul.f32.gmra.mxu0 %v1002
        %v1042 = vpop.f32.mrf.mxu0
        %v1043 = vadd.f32 0.0, %v1042
        %1044 = vmatmul.f32.gmra.mxu0 %v1005
        %v1045 = vpop.f32.mrf.mxu0
        %v1046 = vadd.f32 0.0, %v1045
        %1047 = vdwg.mxu0
        %v1048 = vadd.f32 %v970, %v1025
        %v1049 = vadd.f32 %v971, %v1028
        %v1050 = vadd.f32 %v972, %v1031
        %v1051 = vadd.f32 %v973, %v1034
        %v1052 = vadd.f32 %v974, %v1037
        %v1053 = vadd.f32 %v975, %v1040
        %v1054 = vadd.f32 %v976, %v1043
        %v1055 = vadd.f32 %v977, %v1046
        %v1056 = vld [vmem:[%s588] sm:$0xff]
        %v1057 = vld [vmem:[%s588 + $0x8] sm:$0xff]
        %v1058 = vld [vmem:[%s588 + $0x10] sm:$0xff]
        %v1059 = vld [vmem:[%s588 + $0x18] sm:$0xff]
        %v1060 = vld [vmem:[%s588 + $0x20] sm:$0xff]
        %v1061 = vld [vmem:[%s588 + $0x28] sm:$0xff]
        %v1062 = vld [vmem:[%s588 + $0x30] sm:$0xff]
        %v1063 = vld [vmem:[%s588 + $0x38] sm:$0xff]
        %v1072 = vrot.slane %v1056, 7
        %v1073 = vrot.slane %v1057, 7
        %v1074 = vrot.slane %v1058, 7
        %v1075 = vrot.slane %v1059, 7
        %v1076 = vrot.slane %v1060, 7
        %v1077 = vrot.slane %v1061, 7
        %v1078 = vrot.slane %v1062, 7
        %v1079 = vrot.slane %v1063, 7
        %v1088 = vsel %vm797, 0.0, %v1072
        %v1089 = vsel %vm797, 0.0, %v1073
        %v1090 = vsel %vm797, 0.0, %v1074
        %v1091 = vsel %vm797, 0.0, %v1075
        %v1092 = vsel %vm797, 0.0, %v1076
        %v1093 = vsel %vm797, 0.0, %v1077
        %v1094 = vsel %vm797, 0.0, %v1078
        %v1095 = vsel %vm797, 0.0, %v1079
        %v1096 = vrot.slane %v1056, 1
        %v1097 = vrot.slane %v1057, 1
        %v1098 = vrot.slane %v1058, 1
        %v1099 = vrot.slane %v1059, 1
        %v1100 = vrot.slane %v1060, 1
        %v1101 = vrot.slane %v1061, 1
        %v1102 = vrot.slane %v1062, 1
        %v1103 = vrot.slane %v1063, 1
        %v1112 = vsel %vm822, %v1096, 0.0
        %v1113 = vsel %vm822, %v1097, 0.0
        %v1114 = vsel %vm822, %v1098, 0.0
        %v1115 = vsel %vm822, %v1099, 0.0
        %v1116 = vsel %vm822, %v1100, 0.0
        %v1117 = vsel %vm822, %v1101, 0.0
        %v1118 = vsel %vm822, %v1102, 0.0
        %v1119 = vsel %vm822, %v1103, 0.0
        %s1120 = scalar_lea.vmem [#allocation12], 96
        %v1121 = vld [vmem:[%s1120] sm:$0xff]
        %v1122 = vld [vmem:[%s1120 + $0x8] sm:$0xff]
        %v1123 = vld [vmem:[%s1120 + $0x10] sm:$0xff]
        %v1124 = vld [vmem:[%s1120 + $0x18] sm:$0xff]
        %v1126 = vsel %vm589, %v1088, 0
        %v1129 = vsel %vm589, %v1089, 0
        %v1132 = vsel %vm589, %v1090, 0
        %v1135 = vsel %vm589, %v1091, 0
        %v1138 = vsel %vm589, %v1092, 0
        %v1141 = vsel %vm589, %v1093, 0
        %v1144 = vsel %vm589, %v1094, 0
        %v1147 = vsel %vm589, %v1095, 0
        %1149 = vmatpush.msra.mxu0 0.0
        %1150 = vmatpush.msra.mxu0 0.0
        %1151 = vmatpush.msra.mxu0 0.0
        %1152 = vmatpush.msra.mxu0 0.0
        %1153 = vmatpush.msra.mxu0 0.0
        %1154 = vmatpush.msra.mxu0 0.0
        %1155 = vmatpush.msra.mxu0 0.0
        %1156 = vmatpush.msra.mxu0 0.0
        %1157 = vmatpush.msra.mxu0 0.0
        %1158 = vmatpush.msra.mxu0 0.0
        %1159 = vmatpush.msra.mxu0 0.0
        %1160 = vmatpush.msra.mxu0 0.0
        %1161 = vmatpush.msra.mxu0 %v1124
        %1162 = vmatpush.msra.mxu0 %v1123
        %1163 = vmatpush.msra.mxu0 %v1122
        %1164 = vmatpush.msra.mxu0 %v1121
        %1165 = vmatmul.f32.gmra.mxu0 %v1126
        %v1166 = vpop.f32.mrf.mxu0
        %v1167 = vadd.f32 0.0, %v1166
        %1168 = vmatmul.f32.gmra.mxu0 %v1129
        %v1169 = vpop.f32.mrf.mxu0
        %v1170 = vadd.f32 0.0, %v1169
        %1171 = vmatmul.f32.gmra.mxu0 %v1132
        %v1172 = vpop.f32.mrf.mxu0
        %v1173 = vadd.f32 0.0, %v1172
        %1174 = vmatmul.f32.gmra.mxu0 %v1135
        %v1175 = vpop.f32.mrf.mxu0
        %v1176 = vadd.f32 0.0, %v1175
        %1177 = vmatmul.f32.gmra.mxu0 %v1138
        %v1178 = vpop.f32.mrf.mxu0
        %v1179 = vadd.f32 0.0, %v1178
        %1180 = vmatmul.f32.gmra.mxu0 %v1141
        %v1181 = vpop.f32.mrf.mxu0
        %v1182 = vadd.f32 0.0, %v1181
        %1183 = vmatmul.f32.gmra.mxu0 %v1144
        %v1184 = vpop.f32.mrf.mxu0
        %v1185 = vadd.f32 0.0, %v1184
        %1186 = vmatmul.f32.gmra.mxu0 %v1147
        %v1187 = vpop.f32.mrf.mxu0
        %v1188 = vadd.f32 0.0, %v1187
        %1189 = vdwg.mxu0
        %v1190 = vadd.f32 %v1048, %v1167
        %v1191 = vadd.f32 %v1049, %v1170
        %v1192 = vadd.f32 %v1050, %v1173
        %v1193 = vadd.f32 %v1051, %v1176
        %v1194 = vadd.f32 %v1052, %v1179
        %v1195 = vadd.f32 %v1053, %v1182
        %v1196 = vadd.f32 %v1054, %v1185
        %v1197 = vadd.f32 %v1055, %v1188
        %s1198 = scalar_lea.vmem [#allocation12], 128
        %v1199 = vld [vmem:[%s1198] sm:$0xff]
        %v1200 = vld [vmem:[%s1198 + $0x8] sm:$0xff]
        %v1201 = vld [vmem:[%s1198 + $0x10] sm:$0xff]
        %v1202 = vld [vmem:[%s1198 + $0x18] sm:$0xff]
        %v1203 = vsel %vm589, %v1056, 0
        %v1205 = vsel %vm589, %v1057, 0
        %v1207 = vsel %vm589, %v1058, 0
        %v1209 = vsel %vm589, %v1059, 0
        %v1211 = vsel %vm589, %v1060, 0
        %v1213 = vsel %vm589, %v1061, 0
        %v1215 = vsel %vm589, %v1062, 0
        %v1217 = vsel %vm589, %v1063, 0
        %1219 = vmatpush.msra.mxu0 0.0
        %1220 = vmatpush.msra.mxu0 0.0
        %1221 = vmatpush.msra.mxu0 0.0
        %1222 = vmatpush.msra.mxu0 0.0
        %1223 = vmatpush.msra.mxu0 0.0
        %1224 = vmatpush.msra.mxu0 0.0
        %1225 = vmatpush.msra.mxu0 0.0
        %1226 = vmatpush.msra.mxu0 0.0
        %1227 = vmatpush.msra.mxu0 0.0
        %1228 = vmatpush.msra.mxu0 0.0
        %1229 = vmatpush.msra.mxu0 0.0
        %1230 = vmatpush.msra.mxu0 0.0
        %1231 = vmatpush.msra.mxu0 %v1202
        %1232 = vmatpush.msra.mxu0 %v1201
        %1233 = vmatpush.msra.mxu0 %v1200
        %1234 = vmatpush.msra.mxu0 %v1199
        %1235 = vmatmul.f32.gmra.mxu0 %v1203
        %v1236 = vpop.f32.mrf.mxu0
        %v1237 = vadd.f32 0.0, %v1236
        %1238 = vmatmul.f32.gmra.mxu0 %v1205
        %v1239 = vpop.f32.mrf.mxu0
        %v1240 = vadd.f32 0.0, %v1239
        %1241 = vmatmul.f32.gmra.mxu0 %v1207
        %v1242 = vpop.f32.mrf.mxu0
        %v1243 = vadd.f32 0.0, %v1242
        %1244 = vmatmul.f32.gmra.mxu0 %v1209
        %v1245 = vpop.f32.mrf.mxu0
        %v1246 = vadd.f32 0.0, %v1245
        %1247 = vmatmul.f32.gmra.mxu0 %v1211
        %v1248 = vpop.f32.mrf.mxu0
        %v1249 = vadd.f32 0.0, %v1248
        %1250 = vmatmul.f32.gmra.mxu0 %v1213
        %v1251 = vpop.f32.mrf.mxu0
        %v1252 = vadd.f32 0.0, %v1251
        %1253 = vmatmul.f32.gmra.mxu0 %v1215
        %v1254 = vpop.f32.mrf.mxu0
        %v1255 = vadd.f32 0.0, %v1254
        %1256 = vmatmul.f32.gmra.mxu0 %v1217
        %v1257 = vpop.f32.mrf.mxu0
        %v1258 = vadd.f32 0.0, %v1257
        %1259 = vdwg.mxu0
        %v1260 = vadd.f32 %v1190, %v1237
        %v1261 = vadd.f32 %v1191, %v1240
        %v1262 = vadd.f32 %v1192, %v1243
        %v1263 = vadd.f32 %v1193, %v1246
        %v1264 = vadd.f32 %v1194, %v1249
        %v1265 = vadd.f32 %v1195, %v1252
        %v1266 = vadd.f32 %v1196, %v1255
        %v1267 = vadd.f32 %v1197, %v1258
        %s1268 = scalar_lea.vmem [#allocation12], 160
        %v1269 = vld [vmem:[%s1268] sm:$0xff]
        %v1270 = vld [vmem:[%s1268 + $0x8] sm:$0xff]
        %v1271 = vld [vmem:[%s1268 + $0x10] sm:$0xff]
        %v1272 = vld [vmem:[%s1268 + $0x18] sm:$0xff]
        %v1274 = vsel %vm589, %v1112, 0
        %v1277 = vsel %vm589, %v1113, 0
        %v1280 = vsel %vm589, %v1114, 0
        %v1283 = vsel %vm589, %v1115, 0
        %v1286 = vsel %vm589, %v1116, 0
        %v1289 = vsel %vm589, %v1117, 0
        %v1292 = vsel %vm589, %v1118, 0
        %v1295 = vsel %vm589, %v1119, 0
        %1297 = vmatpush.msra.mxu0 0.0
        %1298 = vmatpush.msra.mxu0 0.0
        %1299 = vmatpush.msra.mxu0 0.0
        %1300 = vmatpush.msra.mxu0 0.0
        %1301 = vmatpush.msra.mxu0 0.0
        %1302 = vmatpush.msra.mxu0 0.0
        %1303 = vmatpush.msra.mxu0 0.0
        %1304 = vmatpush.msra.mxu0 0.0
        %1305 = vmatpush.msra.mxu0 0.0
        %1306 = vmatpush.msra.mxu0 0.0
        %1307 = vmatpush.msra.mxu0 0.0
        %1308 = vmatpush.msra.mxu0 0.0
        %1309 = vmatpush.msra.mxu0 %v1272
        %1310 = vmatpush.msra.mxu0 %v1271
        %1311 = vmatpush.msra.mxu0 %v1270
        %1312 = vmatpush.msra.mxu0 %v1269
        %1313 = vmatmul.f32.gmra.mxu0 %v1274
        %v1314 = vpop.f32.mrf.mxu0
        %v1315 = vadd.f32 0.0, %v1314
        %1316 = vmatmul.f32.gmra.mxu0 %v1277
        %v1317 = vpop.f32.mrf.mxu0
        %v1318 = vadd.f32 0.0, %v1317
        %1319 = vmatmul.f32.gmra.mxu0 %v1280
        %v1320 = vpop.f32.mrf.mxu0
        %v1321 = vadd.f32 0.0, %v1320
        %1322 = vmatmul.f32.gmra.mxu0 %v1283
        %v1323 = vpop.f32.mrf.mxu0
        %v1324 = vadd.f32 0.0, %v1323
        %1325 = vmatmul.f32.gmra.mxu0 %v1286
        %v1326 = vpop.f32.mrf.mxu0
        %v1327 = vadd.f32 0.0, %v1326
        %1328 = vmatmul.f32.gmra.mxu0 %v1289
        %v1329 = vpop.f32.mrf.mxu0
        %v1330 = vadd.f32 0.0, %v1329
        %1331 = vmatmul.f32.gmra.mxu0 %v1292
        %v1332 = vpop.f32.mrf.mxu0
        %v1333 = vadd.f32 0.0, %v1332
        %1334 = vmatmul.f32.gmra.mxu0 %v1295
        %v1335 = vpop.f32.mrf.mxu0
        %v1336 = vadd.f32 0.0, %v1335
        %1337 = vdwg.mxu0
        %v1338 = vadd.f32 %v1260, %v1315
        %v1339 = vadd.f32 %v1261, %v1318
        %v1340 = vadd.f32 %v1262, %v1321
        %v1341 = vadd.f32 %v1263, %v1324
        %v1342 = vadd.f32 %v1264, %v1327
        %v1343 = vadd.f32 %v1265, %v1330
        %v1344 = vadd.f32 %v1266, %v1333
        %v1345 = vadd.f32 %v1267, %v1336
        %v1346 = vld [vmem:[%s671] sm:$0xff]
        %v1347 = vld [vmem:[%s671 + $0x8] sm:$0xff]
        %v1348 = vld [vmem:[%s671 + $0x10] sm:$0xff]
        %v1349 = vld [vmem:[%s671 + $0x18] sm:$0xff]
        %v1350 = vld [vmem:[%s671 + $0x20] sm:$0xff]
        %v1351 = vld [vmem:[%s671 + $0x28] sm:$0xff]
        %v1352 = vld [vmem:[%s671 + $0x30] sm:$0xff]
        %v1353 = vld [vmem:[%s671 + $0x38] sm:$0xff]
        %v1362 = vrot.slane %v1346, 7
        %v1363 = vrot.slane %v1347, 7
        %v1364 = vrot.slane %v1348, 7
        %v1365 = vrot.slane %v1349, 7
        %v1366 = vrot.slane %v1350, 7
        %v1367 = vrot.slane %v1351, 7
        %v1368 = vrot.slane %v1352, 7
        %v1369 = vrot.slane %v1353, 7
        %v1378 = vsel %vm797, 0.0, %v1362
        %v1379 = vsel %vm797, 0.0, %v1363
        %v1380 = vsel %vm797, 0.0, %v1364
        %v1381 = vsel %vm797, 0.0, %v1365
        %v1382 = vsel %vm797, 0.0, %v1366
        %v1383 = vsel %vm797, 0.0, %v1367
        %v1384 = vsel %vm797, 0.0, %v1368
        %v1385 = vsel %vm797, 0.0, %v1369
        %v1386 = vrot.slane %v1346, 1
        %v1387 = vrot.slane %v1347, 1
        %v1388 = vrot.slane %v1348, 1
        %v1389 = vrot.slane %v1349, 1
        %v1390 = vrot.slane %v1350, 1
        %v1391 = vrot.slane %v1351, 1
        %v1392 = vrot.slane %v1352, 1
        %v1393 = vrot.slane %v1353, 1
        %v1402 = vsel %vm822, %v1386, 0.0
        %v1403 = vsel %vm822, %v1387, 0.0
        %v1404 = vsel %vm822, %v1388, 0.0
        %v1405 = vsel %vm822, %v1389, 0.0
        %v1406 = vsel %vm822, %v1390, 0.0
        %v1407 = vsel %vm822, %v1391, 0.0
        %v1408 = vsel %vm822, %v1392, 0.0
        %v1409 = vsel %vm822, %v1393, 0.0
        %s1410 = scalar_lea.vmem [#allocation12], 192
        %v1411 = vld [vmem:[%s1410] sm:$0xff]
        %v1412 = vld [vmem:[%s1410 + $0x8] sm:$0xff]
        %v1413 = vld [vmem:[%s1410 + $0x10] sm:$0xff]
        %v1414 = vld [vmem:[%s1410 + $0x18] sm:$0xff]
        %v1416 = vsel %vm589, %v1378, 0
        %v1419 = vsel %vm589, %v1379, 0
        %v1422 = vsel %vm589, %v1380, 0
        %v1425 = vsel %vm589, %v1381, 0
        %v1428 = vsel %vm589, %v1382, 0
        %v1431 = vsel %vm589, %v1383, 0
        %v1434 = vsel %vm589, %v1384, 0
        %v1437 = vsel %vm589, %v1385, 0
        %1439 = vmatpush.msra.mxu0 0.0
        %1440 = vmatpush.msra.mxu0 0.0
        %1441 = vmatpush.msra.mxu0 0.0
        %1442 = vmatpush.msra.mxu0 0.0
        %1443 = vmatpush.msra.mxu0 0.0
        %1444 = vmatpush.msra.mxu0 0.0
        %1445 = vmatpush.msra.mxu0 0.0
        %1446 = vmatpush.msra.mxu0 0.0
        %1447 = vmatpush.msra.mxu0 0.0
        %1448 = vmatpush.msra.mxu0 0.0
        %1449 = vmatpush.msra.mxu0 0.0
        %1450 = vmatpush.msra.mxu0 0.0
        %1451 = vmatpush.msra.mxu0 %v1414
        %1452 = vmatpush.msra.mxu0 %v1413
        %1453 = vmatpush.msra.mxu0 %v1412
        %1454 = vmatpush.msra.mxu0 %v1411
        %1455 = vmatmul.f32.gmra.mxu0 %v1416
        %v1456 = vpop.f32.mrf.mxu0
        %v1457 = vadd.f32 0.0, %v1456
        %1458 = vmatmul.f32.gmra.mxu0 %v1419
        %v1459 = vpop.f32.mrf.mxu0
        %v1460 = vadd.f32 0.0, %v1459
        %1461 = vmatmul.f32.gmra.mxu0 %v1422
        %v1462 = vpop.f32.mrf.mxu0
        %v1463 = vadd.f32 0.0, %v1462
        %1464 = vmatmul.f32.gmra.mxu0 %v1425
        %v1465 = vpop.f32.mrf.mxu0
        %v1466 = vadd.f32 0.0, %v1465
        %1467 = vmatmul.f32.gmra.mxu0 %v1428
        %v1468 = vpop.f32.mrf.mxu0
        %v1469 = vadd.f32 0.0, %v1468
        %1470 = vmatmul.f32.gmra.mxu0 %v1431
        %v1471 = vpop.f32.mrf.mxu0
        %v1472 = vadd.f32 0.0, %v1471
        %1473 = vmatmul.f32.gmra.mxu0 %v1434
        %v1474 = vpop.f32.mrf.mxu0
        %v1475 = vadd.f32 0.0, %v1474
        %1476 = vmatmul.f32.gmra.mxu0 %v1437
        %v1477 = vpop.f32.mrf.mxu0
        %v1478 = vadd.f32 0.0, %v1477
        %1479 = vdwg.mxu0
        %v1480 = vadd.f32 %v1338, %v1457
        %v1481 = vadd.f32 %v1339, %v1460
        %v1482 = vadd.f32 %v1340, %v1463
        %v1483 = vadd.f32 %v1341, %v1466
        %v1484 = vadd.f32 %v1342, %v1469
        %v1485 = vadd.f32 %v1343, %v1472
        %v1486 = vadd.f32 %v1344, %v1475
        %v1487 = vadd.f32 %v1345, %v1478
        %s1488 = scalar_lea.vmem [#allocation12], 224
        %v1489 = vld [vmem:[%s1488] sm:$0xff]
        %v1490 = vld [vmem:[%s1488 + $0x8] sm:$0xff]
        %v1491 = vld [vmem:[%s1488 + $0x10] sm:$0xff]
        %v1492 = vld [vmem:[%s1488 + $0x18] sm:$0xff]
        %v1493 = vsel %vm589, %v1346, 0
        %v1495 = vsel %vm589, %v1347, 0
        %v1497 = vsel %vm589, %v1348, 0
        %v1499 = vsel %vm589, %v1349, 0
        %v1501 = vsel %vm589, %v1350, 0
        %v1503 = vsel %vm589, %v1351, 0
        %v1505 = vsel %vm589, %v1352, 0
        %v1507 = vsel %vm589, %v1353, 0
        %1509 = vmatpush.msra.mxu0 0.0
        %1510 = vmatpush.msra.mxu0 0.0
        %1511 = vmatpush.msra.mxu0 0.0
        %1512 = vmatpush.msra.mxu0 0.0
        %1513 = vmatpush.msra.mxu0 0.0
        %1514 = vmatpush.msra.mxu0 0.0
        %1515 = vmatpush.msra.mxu0 0.0
        %1516 = vmatpush.msra.mxu0 0.0
        %1517 = vmatpush.msra.mxu0 0.0
        %1518 = vmatpush.msra.mxu0 0.0
        %1519 = vmatpush.msra.mxu0 0.0
        %1520 = vmatpush.msra.mxu0 0.0
        %1521 = vmatpush.msra.mxu0 %v1492
        %1522 = vmatpush.msra.mxu0 %v1491
        %1523 = vmatpush.msra.mxu0 %v1490
        %1524 = vmatpush.msra.mxu0 %v1489
        %1525 = vmatmul.f32.gmra.mxu0 %v1493
        %v1526 = vpop.f32.mrf.mxu0
        %v1527 = vadd.f32 0.0, %v1526
        %1528 = vmatmul.f32.gmra.mxu0 %v1495
        %v1529 = vpop.f32.mrf.mxu0
        %v1530 = vadd.f32 0.0, %v1529
        %1531 = vmatmul.f32.gmra.mxu0 %v1497
        %v1532 = vpop.f32.mrf.mxu0
        %v1533 = vadd.f32 0.0, %v1532
        %1534 = vmatmul.f32.gmra.mxu0 %v1499
        %v1535 = vpop.f32.mrf.mxu0
        %v1536 = vadd.f32 0.0, %v1535
        %1537 = vmatmul.f32.gmra.mxu0 %v1501
        %v1538 = vpop.f32.mrf.mxu0
        %v1539 = vadd.f32 0.0, %v1538
        %1540 = vmatmul.f32.gmra.mxu0 %v1503
        %v1541 = vpop.f32.mrf.mxu0
        %v1542 = vadd.f32 0.0, %v1541
        %1543 = vmatmul.f32.gmra.mxu0 %v1505
        %v1544 = vpop.f32.mrf.mxu0
        %v1545 = vadd.f32 0.0, %v1544
        %1546 = vmatmul.f32.gmra.mxu0 %v1507
        %v1547 = vpop.f32.mrf.mxu0
        %v1548 = vadd.f32 0.0, %v1547
        %1549 = vdwg.mxu0
        %v1550 = vadd.f32 %v1480, %v1527
        %v1551 = vadd.f32 %v1481, %v1530
        %v1552 = vadd.f32 %v1482, %v1533
        %v1553 = vadd.f32 %v1483, %v1536
        %v1554 = vadd.f32 %v1484, %v1539
        %v1555 = vadd.f32 %v1485, %v1542
        %v1556 = vadd.f32 %v1486, %v1545
        %v1557 = vadd.f32 %v1487, %v1548
        %s1558 = scalar_lea.vmem [#allocation12], 256
        %v1559 = vld [vmem:[%s1558] sm:$0xff]
        %v1560 = vld [vmem:[%s1558 + $0x8] sm:$0xff]
        %v1561 = vld [vmem:[%s1558 + $0x10] sm:$0xff]
        %v1562 = vld [vmem:[%s1558 + $0x18] sm:$0xff]
        %v1564 = vsel %vm589, %v1402, 0
        %v1567 = vsel %vm589, %v1403, 0
        %v1570 = vsel %vm589, %v1404, 0
        %v1573 = vsel %vm589, %v1405, 0
        %v1576 = vsel %vm589, %v1406, 0
        %v1579 = vsel %vm589, %v1407, 0
        %v1582 = vsel %vm589, %v1408, 0
        %v1585 = vsel %vm589, %v1409, 0
        %1587 = vmatpush.msra.mxu0 0.0
        %1588 = vmatpush.msra.mxu0 0.0
        %1589 = vmatpush.msra.mxu0 0.0
        %1590 = vmatpush.msra.mxu0 0.0
        %1591 = vmatpush.msra.mxu0 0.0
        %1592 = vmatpush.msra.mxu0 0.0
        %1593 = vmatpush.msra.mxu0 0.0
        %1594 = vmatpush.msra.mxu0 0.0
        %1595 = vmatpush.msra.mxu0 0.0
        %1596 = vmatpush.msra.mxu0 0.0
        %1597 = vmatpush.msra.mxu0 0.0
        %1598 = vmatpush.msra.mxu0 0.0
        %1599 = vmatpush.msra.mxu0 %v1562
        %1600 = vmatpush.msra.mxu0 %v1561
        %1601 = vmatpush.msra.mxu0 %v1560
        %1602 = vmatpush.msra.mxu0 %v1559
        %1603 = vmatmul.f32.gmra.mxu0 %v1564
        %v1604 = vpop.f32.mrf.mxu0
        %v1605 = vadd.f32 0.0, %v1604
        %1606 = vmatmul.f32.gmra.mxu0 %v1567
        %v1607 = vpop.f32.mrf.mxu0
        %v1608 = vadd.f32 0.0, %v1607
        %1609 = vmatmul.f32.gmra.mxu0 %v1570
        %v1610 = vpop.f32.mrf.mxu0
        %v1611 = vadd.f32 0.0, %v1610
        %1612 = vmatmul.f32.gmra.mxu0 %v1573
        %v1613 = vpop.f32.mrf.mxu0
        %v1614 = vadd.f32 0.0, %v1613
        %1615 = vmatmul.f32.gmra.mxu0 %v1576
        %v1616 = vpop.f32.mrf.mxu0
        %v1617 = vadd.f32 0.0, %v1616
        %1618 = vmatmul.f32.gmra.mxu0 %v1579
        %v1619 = vpop.f32.mrf.mxu0
        %v1620 = vadd.f32 0.0, %v1619
        %1621 = vmatmul.f32.gmra.mxu0 %v1582
        %v1622 = vpop.f32.mrf.mxu0
        %v1623 = vadd.f32 0.0, %v1622
        %1624 = vmatmul.f32.gmra.mxu0 %v1585
        %v1625 = vpop.f32.mrf.mxu0
        %v1626 = vadd.f32 0.0, %v1625
        %1627 = vdwg.mxu0
        %v1628 = vadd.f32 %v1550, %v1605
        %v1629 = vadd.f32 %v1551, %v1608
        %v1630 = vadd.f32 %v1552, %v1611
        %v1631 = vadd.f32 %v1553, %v1614
        %v1632 = vadd.f32 %v1554, %v1617
        %v1633 = vadd.f32 %v1555, %v1620
        %v1634 = vadd.f32 %v1556, %v1623
        %v1635 = vadd.f32 %v1557, %v1626
        %vm1636 = vcmp.ge.f32.partialorder %v1628, 0.0
        %vm1637 = vcmp.ge.f32.partialorder %v1629, 0.0
        %vm1638 = vcmp.ge.f32.partialorder %v1630, 0.0
        %vm1639 = vcmp.ge.f32.partialorder %v1631, 0.0
        %vm1640 = vcmp.ge.f32.partialorder %v1632, 0.0
        %vm1641 = vcmp.ge.f32.partialorder %v1633, 0.0
        %vm1642 = vcmp.ge.f32.partialorder %v1634, 0.0
        %vm1643 = vcmp.ge.f32.partialorder %v1635, 0.0
        %v1644 = vmul.f32 %v1628, 0.1
        %v1645 = vmul.f32 %v1629, 0.1
        %v1646 = vmul.f32 %v1630, 0.1
        %v1647 = vmul.f32 %v1631, 0.1
        %v1648 = vmul.f32 %v1632, 0.1
        %v1649 = vmul.f32 %v1633, 0.1
        %v1650 = vmul.f32 %v1634, 0.1
        %v1651 = vmul.f32 %v1635, 0.1
        %v1652 = vsel %vm1636, %v1628, %v1644
        %v1653 = vsel %vm1637, %v1629, %v1645
        %v1654 = vsel %vm1638, %v1630, %v1646
        %v1655 = vsel %vm1639, %v1631, %v1647
        %v1656 = vsel %vm1640, %v1632, %v1648
        %v1657 = vsel %vm1641, %v1633, %v1649
        %v1658 = vsel %vm1642, %v1634, %v1650
        %v1659 = vsel %vm1643, %v1635, %v1651
        %s1660 = scalar_lea.vmem [#allocation9], 32
        %v1661 = vld [vmem:[%s1660] sm:$0xff]
        %v1662 = vld [vmem:[%s1660 + $0x8] sm:$0xff]
        %s1663 = scalar_lea.vmem [#allocation11], 2
        %v1664 = vld [vmem:[%s1663] sm:$0x1]
        %v1666 = vperm.slane %v1664, 0
        %1668 = vmatpush.msra.mxu0 0.0
        %1669 = vmatpush.msra.mxu0 0.0
        %1670 = vmatpush.msra.mxu0 0.0
        %1671 = vmatpush.msra.mxu0 0.0
        %1672 = vmatpush.msra.mxu0 0.0
        %1673 = vmatpush.msra.mxu0 0.0
        %1674 = vmatpush.msra.mxu0 0.0
        %1675 = vmatpush.msra.mxu0 0.0
        %1676 = vmatpush.msra.mxu0 0.0
        %1677 = vmatpush.msra.mxu0 0.0
        %1678 = vmatpush.msra.mxu0 0.0
        %1679 = vmatpush.msra.mxu0 0.0
        %1680 = vmatpush.msra.mxu0 0.0
        %1681 = vmatpush.msra.mxu0 0.0
        %1682 = vmatpush.msra.mxu0 %v1662
        %1683 = vmatpush.msra.mxu0 %v1661
        %1684 = vmatmul.f32.gmra.mxu0 %v500
        %v1685 = vpop.f32.mrf.mxu0
        %v1686 = vadd.f32 %v1666, %v1685
        %1687 = vmatmul.f32.gmra.mxu0 %v503
        %v1688 = vpop.f32.mrf.mxu0
        %v1689 = vadd.f32 %v1666, %v1688
        %1690 = vmatmul.f32.gmra.mxu0 %v506
        %v1691 = vpop.f32.mrf.mxu0
        %v1692 = vadd.f32 %v1666, %v1691
        %1693 = vmatmul.f32.gmra.mxu0 %v509
        %v1694 = vpop.f32.mrf.mxu0
        %v1695 = vadd.f32 %v1666, %v1694
        %1696 = vmatmul.f32.gmra.mxu0 %v512
        %v1697 = vpop.f32.mrf.mxu0
        %v1698 = vadd.f32 %v1666, %v1697
        %1699 = vmatmul.f32.gmra.mxu0 %v515
        %v1700 = vpop.f32.mrf.mxu0
        %v1701 = vadd.f32 %v1666, %v1700
        %1702 = vmatmul.f32.gmra.mxu0 %v518
        %v1703 = vpop.f32.mrf.mxu0
        %v1704 = vadd.f32 %v1666, %v1703
        %1705 = vmatmul.f32.gmra.mxu0 %v521
        %v1706 = vpop.f32.mrf.mxu0
        %v1707 = vadd.f32 %v1666, %v1706
        %1708 = vdwg.mxu0
        %v1709 = vadd.f32 %v1652, %v1686
        %v1710 = vadd.f32 %v1653, %v1689
        %v1711 = vadd.f32 %v1654, %v1692
        %v1712 = vadd.f32 %v1655, %v1695
        %v1713 = vadd.f32 %v1656, %v1698
        %v1714 = vadd.f32 %v1657, %v1701
        %v1715 = vadd.f32 %v1658, %v1704
        %v1716 = vadd.f32 %v1659, %v1707
        %1717 = vmatpush.msra.mxu0 0.0
        %1718 = vmatpush.msra.mxu0 0.0
        %1719 = vmatpush.msra.mxu0 0.0
        %1720 = vmatpush.msra.mxu0 0.0
        %1721 = vmatpush.msra.mxu0 0.0
        %1722 = vmatpush.msra.mxu0 0.0
        %1723 = vmatpush.msra.mxu0 0.0
        %1724 = vmatpush.msra.mxu0 0.0
        %1725 = vmatpush.msra.mxu0 0.0
        %1726 = vmatpush.msra.mxu0 0.0
        %1727 = vmatpush.msra.mxu0 0.0
        %1728 = vmatpush.msra.mxu0 0.0
        %1729 = vmatpush.msra.mxu0 %v834
        %1730 = vmatpush.msra.mxu0 %v833
        %1731 = vmatpush.msra.mxu0 %v832
        %1732 = vmatpush.msra.mxu0 %v831
        %1733 = vmatmul.f32.gmra.mxu0 %v1126
        %v1734 = vpop.f32.mrf.mxu0
        %v1735 = vadd.f32 0.0, %v1734
        %1736 = vmatmul.f32.gmra.mxu0 %v1129
        %v1737 = vpop.f32.mrf.mxu0
        %v1738 = vadd.f32 0.0, %v1737
        %1739 = vmatmul.f32.gmra.mxu0 %v1132
        %v1740 = vpop.f32.mrf.mxu0
        %v1741 = vadd.f32 0.0, %v1740
        %1742 = vmatmul.f32.gmra.mxu0 %v1135
        %v1743 = vpop.f32.mrf.mxu0
        %v1744 = vadd.f32 0.0, %v1743
        %1745 = vmatmul.f32.gmra.mxu0 %v1138
        %v1746 = vpop.f32.mrf.mxu0
        %v1747 = vadd.f32 0.0, %v1746
        %1748 = vmatmul.f32.gmra.mxu0 %v1141
        %v1749 = vpop.f32.mrf.mxu0
        %v1750 = vadd.f32 0.0, %v1749
        %1751 = vmatmul.f32.gmra.mxu0 %v1144
        %v1752 = vpop.f32.mrf.mxu0
        %v1753 = vadd.f32 0.0, %v1752
        %1754 = vmatmul.f32.gmra.mxu0 %v1147
        %v1755 = vpop.f32.mrf.mxu0
        %v1756 = vadd.f32 0.0, %v1755
        %1757 = vdwg.mxu0
        %v1758 = vadd.f32 %v764, %v1735
        %v1759 = vadd.f32 %v764, %v1738
        %v1760 = vadd.f32 %v764, %v1741
        %v1761 = vadd.f32 %v764, %v1744
        %v1762 = vadd.f32 %v764, %v1747
        %v1763 = vadd.f32 %v764, %v1750
        %v1764 = vadd.f32 %v764, %v1753
        %v1765 = vadd.f32 %v764, %v1756
        %1766 = vmatpush.msra.mxu0 0.0
        %1767 = vmatpush.msra.mxu0 0.0
        %1768 = vmatpush.msra.mxu0 0.0
        %1769 = vmatpush.msra.mxu0 0.0
        %1770 = vmatpush.msra.mxu0 0.0
        %1771 = vmatpush.msra.mxu0 0.0
        %1772 = vmatpush.msra.mxu0 0.0
        %1773 = vmatpush.msra.mxu0 0.0
        %1774 = vmatpush.msra.mxu0 0.0
        %1775 = vmatpush.msra.mxu0 0.0
        %1776 = vmatpush.msra.mxu0 0.0
        %1777 = vmatpush.msra.mxu0 0.0
        %1778 = vmatpush.msra.mxu0 %v912
        %1779 = vmatpush.msra.mxu0 %v911
        %1780 = vmatpush.msra.mxu0 %v910
        %1781 = vmatpush.msra.mxu0 %v909
        %1782 = vmatmul.f32.gmra.mxu0 %v1203
        %v1783 = vpop.f32.mrf.mxu0
        %v1784 = vadd.f32 0.0, %v1783
        %1785 = vmatmul.f32.gmra.mxu0 %v1205
        %v1786 = vpop.f32.mrf.mxu0
        %v1787 = vadd.f32 0.0, %v1786
        %1788 = vmatmul.f32.gmra.mxu0 %v1207
        %v1789 = vpop.f32.mrf.mxu0
        %v1790 = vadd.f32 0.0, %v1789
        %1791 = vmatmul.f32.gmra.mxu0 %v1209
        %v1792 = vpop.f32.mrf.mxu0
        %v1793 = vadd.f32 0.0, %v1792
        %1794 = vmatmul.f32.gmra.mxu0 %v1211
        %v1795 = vpop.f32.mrf.mxu0
        %v1796 = vadd.f32 0.0, %v1795
        %1797 = vmatmul.f32.gmra.mxu0 %v1213
        %v1798 = vpop.f32.mrf.mxu0
        %v1799 = vadd.f32 0.0, %v1798
        %1800 = vmatmul.f32.gmra.mxu0 %v1215
        %v1801 = vpop.f32.mrf.mxu0
        %v1802 = vadd.f32 0.0, %v1801
        %1803 = vmatmul.f32.gmra.mxu0 %v1217
        %v1804 = vpop.f32.mrf.mxu0
        %v1805 = vadd.f32 0.0, %v1804
        %1806 = vdwg.mxu0
        %v1807 = vadd.f32 %v1758, %v1784
        %v1808 = vadd.f32 %v1759, %v1787
        %v1809 = vadd.f32 %v1760, %v1790
        %v1810 = vadd.f32 %v1761, %v1793
        %v1811 = vadd.f32 %v1762, %v1796
        %v1812 = vadd.f32 %v1763, %v1799
        %v1813 = vadd.f32 %v1764, %v1802
        %v1814 = vadd.f32 %v1765, %v1805
        %1815 = vmatpush.msra.mxu0 0.0
        %1816 = vmatpush.msra.mxu0 0.0
        %1817 = vmatpush.msra.mxu0 0.0
        %1818 = vmatpush.msra.mxu0 0.0
        %1819 = vmatpush.msra.mxu0 0.0
        %1820 = vmatpush.msra.mxu0 0.0
        %1821 = vmatpush.msra.mxu0 0.0
        %1822 = vmatpush.msra.mxu0 0.0
        %1823 = vmatpush.msra.mxu0 0.0
        %1824 = vmatpush.msra.mxu0 0.0
        %1825 = vmatpush.msra.mxu0 0.0
        %1826 = vmatpush.msra.mxu0 0.0
        %1827 = vmatpush.msra.mxu0 %v982
        %1828 = vmatpush.msra.mxu0 %v981
        %1829 = vmatpush.msra.mxu0 %v980
        %1830 = vmatpush.msra.mxu0 %v979
        %1831 = vmatmul.f32.gmra.mxu0 %v1274
        %v1832 = vpop.f32.mrf.mxu0
        %v1833 = vadd.f32 0.0, %v1832
        %1834 = vmatmul.f32.gmra.mxu0 %v1277
        %v1835 = vpop.f32.mrf.mxu0
        %v1836 = vadd.f32 0.0, %v1835
        %1837 = vmatmul.f32.gmra.mxu0 %v1280
        %v1838 = vpop.f32.mrf.mxu0
        %v1839 = vadd.f32 0.0, %v1838
        %1840 = vmatmul.f32.gmra.mxu0 %v1283
        %v1841 = vpop.f32.mrf.mxu0
        %v1842 = vadd.f32 0.0, %v1841
        %1843 = vmatmul.f32.gmra.mxu0 %v1286
        %v1844 = vpop.f32.mrf.mxu0
        %v1845 = vadd.f32 0.0, %v1844
        %1846 = vmatmul.f32.gmra.mxu0 %v1289
        %v1847 = vpop.f32.mrf.mxu0
        %v1848 = vadd.f32 0.0, %v1847
        %1849 = vmatmul.f32.gmra.mxu0 %v1292
        %v1850 = vpop.f32.mrf.mxu0
        %v1851 = vadd.f32 0.0, %v1850
        %1852 = vmatmul.f32.gmra.mxu0 %v1295
        %v1853 = vpop.f32.mrf.mxu0
        %v1854 = vadd.f32 0.0, %v1853
        %1855 = vdwg.mxu0
        %v1856 = vadd.f32 %v1807, %v1833
        %v1857 = vadd.f32 %v1808, %v1836
        %v1858 = vadd.f32 %v1809, %v1839
        %v1859 = vadd.f32 %v1810, %v1842
        %v1860 = vadd.f32 %v1811, %v1845
        %v1861 = vadd.f32 %v1812, %v1848
        %v1862 = vadd.f32 %v1813, %v1851
        %v1863 = vadd.f32 %v1814, %v1854
        %1864 = vmatpush.msra.mxu0 0.0
        %1865 = vmatpush.msra.mxu0 0.0
        %1866 = vmatpush.msra.mxu0 0.0
        %1867 = vmatpush.msra.mxu0 0.0
        %1868 = vmatpush.msra.mxu0 0.0
        %1869 = vmatpush.msra.mxu0 0.0
        %1870 = vmatpush.msra.mxu0 0.0
        %1871 = vmatpush.msra.mxu0 0.0
        %1872 = vmatpush.msra.mxu0 0.0
        %1873 = vmatpush.msra.mxu0 0.0
        %1874 = vmatpush.msra.mxu0 0.0
        %1875 = vmatpush.msra.mxu0 0.0
        %1876 = vmatpush.msra.mxu0 %v1124
        %1877 = vmatpush.msra.mxu0 %v1123
        %1878 = vmatpush.msra.mxu0 %v1122
        %1879 = vmatpush.msra.mxu0 %v1121
        %1880 = vmatmul.f32.gmra.mxu0 %v1416
        %v1881 = vpop.f32.mrf.mxu0
        %v1882 = vadd.f32 0.0, %v1881
        %1883 = vmatmul.f32.gmra.mxu0 %v1419
        %v1884 = vpop.f32.mrf.mxu0
        %v1885 = vadd.f32 0.0, %v1884
        %1886 = vmatmul.f32.gmra.mxu0 %v1422
        %v1887 = vpop.f32.mrf.mxu0
        %v1888 = vadd.f32 0.0, %v1887
        %1889 = vmatmul.f32.gmra.mxu0 %v1425
        %v1890 = vpop.f32.mrf.mxu0
        %v1891 = vadd.f32 0.0, %v1890
        %1892 = vmatmul.f32.gmra.mxu0 %v1428
        %v1893 = vpop.f32.mrf.mxu0
        %v1894 = vadd.f32 0.0, %v1893
        %1895 = vmatmul.f32.gmra.mxu0 %v1431
        %v1896 = vpop.f32.mrf.mxu0
        %v1897 = vadd.f32 0.0, %v1896
        %1898 = vmatmul.f32.gmra.mxu0 %v1434
        %v1899 = vpop.f32.mrf.mxu0
        %v1900 = vadd.f32 0.0, %v1899
        %1901 = vmatmul.f32.gmra.mxu0 %v1437
        %v1902 = vpop.f32.mrf.mxu0
        %v1903 = vadd.f32 0.0, %v1902
        %1904 = vdwg.mxu0
        %v1905 = vadd.f32 %v1856, %v1882
        %v1906 = vadd.f32 %v1857, %v1885
        %v1907 = vadd.f32 %v1858, %v1888
        %v1908 = vadd.f32 %v1859, %v1891
        %v1909 = vadd.f32 %v1860, %v1894
        %v1910 = vadd.f32 %v1861, %v1897
        %v1911 = vadd.f32 %v1862, %v1900
        %v1912 = vadd.f32 %v1863, %v1903
        %1913 = vmatpush.msra.mxu0 0.0
        %1914 = vmatpush.msra.mxu0 0.0
        %1915 = vmatpush.msra.mxu0 0.0
        %1916 = vmatpush.msra.mxu0 0.0
        %1917 = vmatpush.msra.mxu0 0.0
        %1918 = vmatpush.msra.mxu0 0.0
        %1919 = vmatpush.msra.mxu0 0.0
        %1920 = vmatpush.msra.mxu0 0.0
        %1921 = vmatpush.msra.mxu0 0.0
        %1922 = vmatpush.msra.mxu0 0.0
        %1923 = vmatpush.msra.mxu0 0.0
        %1924 = vmatpush.msra.mxu0 0.0
        %1925 = vmatpush.msra.mxu0 %v1202
        %1926 = vmatpush.msra.mxu0 %v1201
        %1927 = vmatpush.msra.mxu0 %v1200
        %1928 = vmatpush.msra.mxu0 %v1199
        %1929 = vmatmul.f32.gmra.mxu0 %v1493
        %v1930 = vpop.f32.mrf.mxu0
        %v1931 = vadd.f32 0.0, %v1930
        %1932 = vmatmul.f32.gmra.mxu0 %v1495
        %v1933 = vpop.f32.mrf.mxu0
        %v1934 = vadd.f32 0.0, %v1933
        %1935 = vmatmul.f32.gmra.mxu0 %v1497
        %v1936 = vpop.f32.mrf.mxu0
        %v1937 = vadd.f32 0.0, %v1936
        %1938 = vmatmul.f32.gmra.mxu0 %v1499
        %v1939 = vpop.f32.mrf.mxu0
        %v1940 = vadd.f32 0.0, %v1939
        %1941 = vmatmul.f32.gmra.mxu0 %v1501
        %v1942 = vpop.f32.mrf.mxu0
        %v1943 = vadd.f32 0.0, %v1942
        %1944 = vmatmul.f32.gmra.mxu0 %v1503
        %v1945 = vpop.f32.mrf.mxu0
        %v1946 = vadd.f32 0.0, %v1945
        %1947 = vmatmul.f32.gmra.mxu0 %v1505
        %v1948 = vpop.f32.mrf.mxu0
        %v1949 = vadd.f32 0.0, %v1948
        %1950 = vmatmul.f32.gmra.mxu0 %v1507
        %v1951 = vpop.f32.mrf.mxu0
        %v1952 = vadd.f32 0.0, %v1951
        %1953 = vdwg.mxu0
        %v1954 = vadd.f32 %v1905, %v1931
        %v1955 = vadd.f32 %v1906, %v1934
        %v1956 = vadd.f32 %v1907, %v1937
        %v1957 = vadd.f32 %v1908, %v1940
        %v1958 = vadd.f32 %v1909, %v1943
        %v1959 = vadd.f32 %v1910, %v1946
        %v1960 = vadd.f32 %v1911, %v1949
        %v1961 = vadd.f32 %v1912, %v1952
        %1962 = vmatpush.msra.mxu0 0.0
        %1963 = vmatpush.msra.mxu0 0.0
        %1964 = vmatpush.msra.mxu0 0.0
        %1965 = vmatpush.msra.mxu0 0.0
        %1966 = vmatpush.msra.mxu0 0.0
        %1967 = vmatpush.msra.mxu0 0.0
        %1968 = vmatpush.msra.mxu0 0.0
        %1969 = vmatpush.msra.mxu0 0.0
        %1970 = vmatpush.msra.mxu0 0.0
        %1971 = vmatpush.msra.mxu0 0.0
        %1972 = vmatpush.msra.mxu0 0.0
        %1973 = vmatpush.msra.mxu0 0.0
        %1974 = vmatpush.msra.mxu0 %v1272
        %1975 = vmatpush.msra.mxu0 %v1271
        %1976 = vmatpush.msra.mxu0 %v1270
        %1977 = vmatpush.msra.mxu0 %v1269
        %1978 = vmatmul.f32.gmra.mxu0 %v1564
        %v1979 = vpop.f32.mrf.mxu0
        %v1980 = vadd.f32 0.0, %v1979
        %1981 = vmatmul.f32.gmra.mxu0 %v1567
        %v1982 = vpop.f32.mrf.mxu0
        %v1983 = vadd.f32 0.0, %v1982
        %1984 = vmatmul.f32.gmra.mxu0 %v1570
        %v1985 = vpop.f32.mrf.mxu0
        %v1986 = vadd.f32 0.0, %v1985
        %1987 = vmatmul.f32.gmra.mxu0 %v1573
        %v1988 = vpop.f32.mrf.mxu0
        %v1989 = vadd.f32 0.0, %v1988
        %1990 = vmatmul.f32.gmra.mxu0 %v1576
        %v1991 = vpop.f32.mrf.mxu0
        %v1992 = vadd.f32 0.0, %v1991
        %1993 = vmatmul.f32.gmra.mxu0 %v1579
        %v1994 = vpop.f32.mrf.mxu0
        %v1995 = vadd.f32 0.0, %v1994
        %1996 = vmatmul.f32.gmra.mxu0 %v1582
        %v1997 = vpop.f32.mrf.mxu0
        %v1998 = vadd.f32 0.0, %v1997
        %1999 = vmatmul.f32.gmra.mxu0 %v1585
        %v2000 = vpop.f32.mrf.mxu0
        %v2001 = vadd.f32 0.0, %v2000
        %2002 = vdwg.mxu0
        %v2003 = vadd.f32 %v1954, %v1980
        %v2004 = vadd.f32 %v1955, %v1983
        %v2005 = vadd.f32 %v1956, %v1986
        %v2006 = vadd.f32 %v1957, %v1989
        %v2007 = vadd.f32 %v1958, %v1992
        %v2008 = vadd.f32 %v1959, %v1995
        %v2009 = vadd.f32 %v1960, %v1998
        %v2010 = vadd.f32 %v1961, %v2001
        %s2011 = scalar_lea.vmem [#allocation2], 16
        %v2012 = vld [vmem:[%s2011] sm:$0xff]
        %v2013 = vld [vmem:[%s2011 + $0x8] sm:$0xff]
        %v2014 = vld [vmem:[%s2011 + $0x10] sm:$0xff]
        %v2015 = vld [vmem:[%s2011 + $0x18] sm:$0xff]
        %v2016 = vld [vmem:[%s2011 + $0x20] sm:$0xff]
        %v2017 = vld [vmem:[%s2011 + $0x28] sm:$0xff]
        %v2018 = vld [vmem:[%s2011 + $0x30] sm:$0xff]
        %v2019 = vld [vmem:[%s2011 + $0x38] sm:$0xff]
        %v2028 = vrot.slane %v2012, 7
        %v2029 = vrot.slane %v2013, 7
        %v2030 = vrot.slane %v2014, 7
        %v2031 = vrot.slane %v2015, 7
        %v2032 = vrot.slane %v2016, 7
        %v2033 = vrot.slane %v2017, 7
        %v2034 = vrot.slane %v2018, 7
        %v2035 = vrot.slane %v2019, 7
        %v2044 = vsel %vm797, 0.0, %v2028
        %v2045 = vsel %vm797, 0.0, %v2029
        %v2046 = vsel %vm797, 0.0, %v2030
        %v2047 = vsel %vm797, 0.0, %v2031
        %v2048 = vsel %vm797, 0.0, %v2032
        %v2049 = vsel %vm797, 0.0, %v2033
        %v2050 = vsel %vm797, 0.0, %v2034
        %v2051 = vsel %vm797, 0.0, %v2035
        %v2052 = vrot.slane %v2012, 1
        %v2053 = vrot.slane %v2013, 1
        %v2054 = vrot.slane %v2014, 1
        %v2055 = vrot.slane %v2015, 1
        %v2056 = vrot.slane %v2016, 1
        %v2057 = vrot.slane %v2017, 1
        %v2058 = vrot.slane %v2018, 1
        %v2059 = vrot.slane %v2019, 1
        %v2068 = vsel %vm822, %v2052, 0.0
        %v2069 = vsel %vm822, %v2053, 0.0
        %v2070 = vsel %vm822, %v2054, 0.0
        %v2071 = vsel %vm822, %v2055, 0.0
        %v2072 = vsel %vm822, %v2056, 0.0
        %v2073 = vsel %vm822, %v2057, 0.0
        %v2074 = vsel %vm822, %v2058, 0.0
        %v2075 = vsel %vm822, %v2059, 0.0
        %v2077 = vsel %vm589, %v2044, 0
        %v2080 = vsel %vm589, %v2045, 0
        %v2083 = vsel %vm589, %v2046, 0
        %v2086 = vsel %vm589, %v2047, 0
        %v2089 = vsel %vm589, %v2048, 0
        %v2092 = vsel %vm589, %v2049, 0
        %v2095 = vsel %vm589, %v2050, 0
        %v2098 = vsel %vm589, %v2051, 0
        %2100 = vmatpush.msra.mxu0 0.0
        %2101 = vmatpush.msra.mxu0 0.0
        %2102 = vmatpush.msra.mxu0 0.0
        %2103 = vmatpush.msra.mxu0 0.0
        %2104 = vmatpush.msra.mxu0 0.0
        %2105 = vmatpush.msra.mxu0 0.0
        %2106 = vmatpush.msra.mxu0 0.0
        %2107 = vmatpush.msra.mxu0 0.0
        %2108 = vmatpush.msra.mxu0 0.0
        %2109 = vmatpush.msra.mxu0 0.0
        %2110 = vmatpush.msra.mxu0 0.0
        %2111 = vmatpush.msra.mxu0 0.0
        %2112 = vmatpush.msra.mxu0 %v1414
        %2113 = vmatpush.msra.mxu0 %v1413
        %2114 = vmatpush.msra.mxu0 %v1412
        %2115 = vmatpush.msra.mxu0 %v1411
        %2116 = vmatmul.f32.gmra.mxu0 %v2077
        %v2117 = vpop.f32.mrf.mxu0
        %v2118 = vadd.f32 0.0, %v2117
        %2119 = vmatmul.f32.gmra.mxu0 %v2080
        %v2120 = vpop.f32.mrf.mxu0
        %v2121 = vadd.f32 0.0, %v2120
        %2122 = vmatmul.f32.gmra.mxu0 %v2083
        %v2123 = vpop.f32.mrf.mxu0
        %v2124 = vadd.f32 0.0, %v2123
        %2125 = vmatmul.f32.gmra.mxu0 %v2086
        %v2126 = vpop.f32.mrf.mxu0
        %v2127 = vadd.f32 0.0, %v2126
        %2128 = vmatmul.f32.gmra.mxu0 %v2089
        %v2129 = vpop.f32.mrf.mxu0
        %v2130 = vadd.f32 0.0, %v2129
        %2131 = vmatmul.f32.gmra.mxu0 %v2092
        %v2132 = vpop.f32.mrf.mxu0
        %v2133 = vadd.f32 0.0, %v2132
        %2134 = vmatmul.f32.gmra.mxu0 %v2095
        %v2135 = vpop.f32.mrf.mxu0
        %v2136 = vadd.f32 0.0, %v2135
        %2137 = vmatmul.f32.gmra.mxu0 %v2098
        %v2138 = vpop.f32.mrf.mxu0
        %v2139 = vadd.f32 0.0, %v2138
        %2140 = vdwg.mxu0
        %v2141 = vadd.f32 %v2003, %v2118
        %v2142 = vadd.f32 %v2004, %v2121
        %v2143 = vadd.f32 %v2005, %v2124
        %v2144 = vadd.f32 %v2006, %v2127
        %v2145 = vadd.f32 %v2007, %v2130
        %v2146 = vadd.f32 %v2008, %v2133
        %v2147 = vadd.f32 %v2009, %v2136
        %v2148 = vadd.f32 %v2010, %v2139
        %v2149 = vsel %vm589, %v2012, 0
        %v2151 = vsel %vm589, %v2013, 0
        %v2153 = vsel %vm589, %v2014, 0
        %v2155 = vsel %vm589, %v2015, 0
        %v2157 = vsel %vm589, %v2016, 0
        %v2159 = vsel %vm589, %v2017, 0
        %v2161 = vsel %vm589, %v2018, 0
        %v2163 = vsel %vm589, %v2019, 0
        %2165 = vmatpush.msra.mxu0 0.0
        %2166 = vmatpush.msra.mxu0 0.0
        %2167 = vmatpush.msra.mxu0 0.0
        %2168 = vmatpush.msra.mxu0 0.0
        %2169 = vmatpush.msra.mxu0 0.0
        %2170 = vmatpush.msra.mxu0 0.0
        %2171 = vmatpush.msra.mxu0 0.0
        %2172 = vmatpush.msra.mxu0 0.0
        %2173 = vmatpush.msra.mxu0 0.0
        %2174 = vmatpush.msra.mxu0 0.0
        %2175 = vmatpush.msra.mxu0 0.0
        %2176 = vmatpush.msra.mxu0 0.0
        %2177 = vmatpush.msra.mxu0 %v1492
        %2178 = vmatpush.msra.mxu0 %v1491
        %2179 = vmatpush.msra.mxu0 %v1490
        %2180 = vmatpush.msra.mxu0 %v1489
        %2181 = vmatmul.f32.gmra.mxu0 %v2149
        %v2182 = vpop.f32.mrf.mxu0
        %v2183 = vadd.f32 0.0, %v2182
        %2184 = vmatmul.f32.gmra.mxu0 %v2151
        %v2185 = vpop.f32.mrf.mxu0
        %v2186 = vadd.f32 0.0, %v2185
        %2187 = vmatmul.f32.gmra.mxu0 %v2153
        %v2188 = vpop.f32.mrf.mxu0
        %v2189 = vadd.f32 0.0, %v2188
        %2190 = vmatmul.f32.gmra.mxu0 %v2155
        %v2191 = vpop.f32.mrf.mxu0
        %v2192 = vadd.f32 0.0, %v2191
        %2193 = vmatmul.f32.gmra.mxu0 %v2157
        %v2194 = vpop.f32.mrf.mxu0
        %v2195 = vadd.f32 0.0, %v2194
        %2196 = vmatmul.f32.gmra.mxu0 %v2159
        %v2197 = vpop.f32.mrf.mxu0
        %v2198 = vadd.f32 0.0, %v2197
        %2199 = vmatmul.f32.gmra.mxu0 %v2161
        %v2200 = vpop.f32.mrf.mxu0
        %v2201 = vadd.f32 0.0, %v2200
        %2202 = vmatmul.f32.gmra.mxu0 %v2163
        %v2203 = vpop.f32.mrf.mxu0
        %v2204 = vadd.f32 0.0, %v2203
        %2205 = vdwg.mxu0
        %v2206 = vadd.f32 %v2141, %v2183
        %v2207 = vadd.f32 %v2142, %v2186
        %v2208 = vadd.f32 %v2143, %v2189
        %v2209 = vadd.f32 %v2144, %v2192
        %v2210 = vadd.f32 %v2145, %v2195
        %v2211 = vadd.f32 %v2146, %v2198
        %v2212 = vadd.f32 %v2147, %v2201
        %v2213 = vadd.f32 %v2148, %v2204
        %v2215 = vsel %vm589, %v2068, 0
        %v2218 = vsel %vm589, %v2069, 0
        %v2221 = vsel %vm589, %v2070, 0
        %v2224 = vsel %vm589, %v2071, 0
        %v2227 = vsel %vm589, %v2072, 0
        %v2230 = vsel %vm589, %v2073, 0
        %v2233 = vsel %vm589, %v2074, 0
        %v2236 = vsel %vm589, %v2075, 0
        %2238 = vmatpush.msra.mxu0 0.0
        %2239 = vmatpush.msra.mxu0 0.0
        %2240 = vmatpush.msra.mxu0 0.0
        %2241 = vmatpush.msra.mxu0 0.0
        %2242 = vmatpush.msra.mxu0 0.0
        %2243 = vmatpush.msra.mxu0 0.0
        %2244 = vmatpush.msra.mxu0 0.0
        %2245 = vmatpush.msra.mxu0 0.0
        %2246 = vmatpush.msra.mxu0 0.0
        %2247 = vmatpush.msra.mxu0 0.0
        %2248 = vmatpush.msra.mxu0 0.0
        %2249 = vmatpush.msra.mxu0 0.0
        %2250 = vmatpush.msra.mxu0 %v1562
        %2251 = vmatpush.msra.mxu0 %v1561
        %2252 = vmatpush.msra.mxu0 %v1560
        %2253 = vmatpush.msra.mxu0 %v1559
        %2254 = vmatmul.f32.gmra.mxu0 %v2215
        %v2255 = vpop.f32.mrf.mxu0
        %v2256 = vadd.f32 0.0, %v2255
        %2257 = vmatmul.f32.gmra.mxu0 %v2218
        %v2258 = vpop.f32.mrf.mxu0
        %v2259 = vadd.f32 0.0, %v2258
        %2260 = vmatmul.f32.gmra.mxu0 %v2221
        %v2261 = vpop.f32.mrf.mxu0
        %v2262 = vadd.f32 0.0, %v2261
        %2263 = vmatmul.f32.gmra.mxu0 %v2224
        %v2264 = vpop.f32.mrf.mxu0
        %v2265 = vadd.f32 0.0, %v2264
        %2266 = vmatmul.f32.gmra.mxu0 %v2227
        %v2267 = vpop.f32.mrf.mxu0
        %v2268 = vadd.f32 0.0, %v2267
        %2269 = vmatmul.f32.gmra.mxu0 %v2230
        %v2270 = vpop.f32.mrf.mxu0
        %v2271 = vadd.f32 0.0, %v2270
        %2272 = vmatmul.f32.gmra.mxu0 %v2233
        %v2273 = vpop.f32.mrf.mxu0
        %v2274 = vadd.f32 0.0, %v2273
        %2275 = vmatmul.f32.gmra.mxu0 %v2236
        %v2276 = vpop.f32.mrf.mxu0
        %v2277 = vadd.f32 0.0, %v2276
        %2278 = vdwg.mxu0
        %v2279 = vadd.f32 %v2206, %v2256
        %v2280 = vadd.f32 %v2207, %v2259
        %v2281 = vadd.f32 %v2208, %v2262
        %v2282 = vadd.f32 %v2209, %v2265
        %v2283 = vadd.f32 %v2210, %v2268
        %v2284 = vadd.f32 %v2211, %v2271
        %v2285 = vadd.f32 %v2212, %v2274
        %v2286 = vadd.f32 %v2213, %v2277
        %vm2287 = vcmp.ge.f32.partialorder %v2279, 0.0
        %vm2288 = vcmp.ge.f32.partialorder %v2280, 0.0
        %vm2289 = vcmp.ge.f32.partialorder %v2281, 0.0
        %vm2290 = vcmp.ge.f32.partialorder %v2282, 0.0
        %vm2291 = vcmp.ge.f32.partialorder %v2283, 0.0
        %vm2292 = vcmp.ge.f32.partialorder %v2284, 0.0
        %vm2293 = vcmp.ge.f32.partialorder %v2285, 0.0
        %vm2294 = vcmp.ge.f32.partialorder %v2286, 0.0
        %v2295 = vmul.f32 %v2279, 0.1
        %v2296 = vmul.f32 %v2280, 0.1
        %v2297 = vmul.f32 %v2281, 0.1
        %v2298 = vmul.f32 %v2282, 0.1
        %v2299 = vmul.f32 %v2283, 0.1
        %v2300 = vmul.f32 %v2284, 0.1
        %v2301 = vmul.f32 %v2285, 0.1
        %v2302 = vmul.f32 %v2286, 0.1
        %v2303 = vsel %vm2287, %v2279, %v2295
        %v2304 = vsel %vm2288, %v2280, %v2296
        %v2305 = vsel %vm2289, %v2281, %v2297
        %v2306 = vsel %vm2290, %v2282, %v2298
        %v2307 = vsel %vm2291, %v2283, %v2299
        %v2308 = vsel %vm2292, %v2284, %v2300
        %v2309 = vsel %vm2293, %v2285, %v2301
        %v2310 = vsel %vm2294, %v2286, %v2302
        %s2311 = scalar_lea.vmem [#allocation9], 48
        %v2312 = vld [vmem:[%s2311] sm:$0xff]
        %v2313 = vld [vmem:[%s2311 + $0x8] sm:$0xff]
        %s2314 = scalar_lea.vmem [#allocation11], 3
        %v2315 = vld [vmem:[%s2314] sm:$0x1]
        %v2317 = vperm.slane %v2315, 0
        %2319 = vmatpush.msra.mxu0 0.0
        %2320 = vmatpush.msra.mxu0 0.0
        %2321 = vmatpush.msra.mxu0 0.0
        %2322 = vmatpush.msra.mxu0 0.0
        %2323 = vmatpush.msra.mxu0 0.0
        %2324 = vmatpush.msra.mxu0 0.0
        %2325 = vmatpush.msra.mxu0 0.0
        %2326 = vmatpush.msra.mxu0 0.0
        %2327 = vmatpush.msra.mxu0 0.0
        %2328 = vmatpush.msra.mxu0 0.0
        %2329 = vmatpush.msra.mxu0 0.0
        %2330 = vmatpush.msra.mxu0 0.0
        %2331 = vmatpush.msra.mxu0 0.0
        %2332 = vmatpush.msra.mxu0 0.0
        %2333 = vmatpush.msra.mxu0 %v2313
        %2334 = vmatpush.msra.mxu0 %v2312
        %2335 = vmatmul.f32.gmra.mxu0 %v500
        %v2336 = vpop.f32.mrf.mxu0
        %v2337 = vadd.f32 %v2317, %v2336
        %2338 = vmatmul.f32.gmra.mxu0 %v503
        %v2339 = vpop.f32.mrf.mxu0
        %v2340 = vadd.f32 %v2317, %v2339
        %2341 = vmatmul.f32.gmra.mxu0 %v506
        %v2342 = vpop.f32.mrf.mxu0
        %v2343 = vadd.f32 %v2317, %v2342
        %2344 = vmatmul.f32.gmra.mxu0 %v509
        %v2345 = vpop.f32.mrf.mxu0
        %v2346 = vadd.f32 %v2317, %v2345
        %2347 = vmatmul.f32.gmra.mxu0 %v512
        %v2348 = vpop.f32.mrf.mxu0
        %v2349 = vadd.f32 %v2317, %v2348
        %2350 = vmatmul.f32.gmra.mxu0 %v515
        %v2351 = vpop.f32.mrf.mxu0
        %v2352 = vadd.f32 %v2317, %v2351
        %2353 = vmatmul.f32.gmra.mxu0 %v518
        %v2354 = vpop.f32.mrf.mxu0
        %v2355 = vadd.f32 %v2317, %v2354
        %2356 = vmatmul.f32.gmra.mxu0 %v521
        %v2357 = vpop.f32.mrf.mxu0
        %v2358 = vadd.f32 %v2317, %v2357
        %2359 = vdwg.mxu0
        %v2360 = vadd.f32 %v2303, %v2337
        %v2361 = vadd.f32 %v2304, %v2340
        %v2362 = vadd.f32 %v2305, %v2343
        %v2363 = vadd.f32 %v2306, %v2346
        %v2364 = vadd.f32 %v2307, %v2349
        %v2365 = vadd.f32 %v2308, %v2352
        %v2366 = vadd.f32 %v2309, %v2355
        %v2367 = vadd.f32 %v2310, %v2358
        %2368 = vst.msk [vmem:[%s473] sm:$0xff] %vm589, %v1709
        %2369 = vst.msk [vmem:[%s473 + $0x8] sm:$0xff] %vm589, %v2360
        %2370 = vst.msk [vmem:[%s473 + $0x10] sm:$0xff] %vm589, %v1710
        %2371 = vst.msk [vmem:[%s473 + $0x18] sm:$0xff] %vm589, %v2361
        %2372 = vst.msk [vmem:[%s473 + $0x20] sm:$0xff] %vm589, %v1711
        %2373 = vst.msk [vmem:[%s473 + $0x28] sm:$0xff] %vm589, %v2362
        %2374 = vst.msk [vmem:[%s473 + $0x30] sm:$0xff] %vm589, %v1712
        %2375 = vst.msk [vmem:[%s473 + $0x38] sm:$0xff] %vm589, %v2363
        %2376 = vst.msk [vmem:[%s473 + $0x40] sm:$0xff] %vm589, %v1713
        %2377 = vst.msk [vmem:[%s473 + $0x48] sm:$0xff] %vm589, %v2364
        %2378 = vst.msk [vmem:[%s473 + $0x50] sm:$0xff] %vm589, %v1714
        %2379 = vst.msk [vmem:[%s473 + $0x58] sm:$0xff] %vm589, %v2365
        %2380 = vst.msk [vmem:[%s473 + $0x60] sm:$0xff] %vm589, %v1715
        %2381 = vst.msk [vmem:[%s473 + $0x68] sm:$0xff] %vm589, %v2366
        %2382 = vst.msk [vmem:[%s473 + $0x70] sm:$0xff] %vm589, %v1716
        %2383 = vst.msk [vmem:[%s473 + $0x78] sm:$0xff] %vm589, %v2367
        %s2384 = sand.u32 %s235, 1
        %s2385 = scalar_lea.sflag [#allocation5], %s2384
        %s2386 = sand.u32 %s235, 1
        %s2387 = smul.addr %s2386, 128
        %s2388 = scalar_lea.vmem [#allocation14], %s2387
        // Predicated region
        $region73: #{tpu_custom_call.1} parent=47 // pred_check
          %p2389 = pneg %p245
        $region74: #{tpu_custom_call.1} parent=47 // pred_check_branch
          %2391 = sbr.rel (%p2389) target = $region76
        $region75: #{tpu_custom_call.1} parent=47 // pred_region
          %s2392 = smul.u32 8, %s34
          %2394 = vsyncadd %s2385, 0
          %s2395 = smul.addr %s2392, 2
          %s2396 = smul.addr %s33, 16
          %s2397 = sadd.s32 %s2395, %s2396
          %s2398 = smul.addr %s2397, 8
          %s2399 = scalar_lea.hbm %s7, %s2398
          %s2400 = sshll.u32 %s2388, 4
          %s2401 = int_to_ptr.vmem [resolvable:$true] %s2400
          %s2402 = sshll.u32 %s2399, 4
          %s2403 = int_to_ptr.hbm [resolvable:$true] %s2402
          %2408 = dma.vmem_to_hbm [thread:$0]  %s2401, 2048, %s2403, %s2385, 128, 128, 8
        $region76: #{tpu_custom_call.1} parent=47 // pred_fallthru
          _
      $region48: #{tpu_custom_call.1} parent=5 // pred_fallthru
        _
      %p2409 = scmp.le.s32.totalorder 2, %s24
      // Predicated region
      $region77: #{tpu_custom_call.1} parent=5 // pred_check
        %p2410 = pneg %p2409
      $region78: #{tpu_custom_call.1} parent=5 // pred_check_branch
        %2412 = sbr.rel (%p2410) target = $region80
      $region79: #{tpu_custom_call.1} parent=5 // pred_region
        %s2413 = ssub.s32 %s24, 2
        // Predicated region
        $region81: #{tpu_custom_call.1} parent=79 // pred_check
          %p2414 = pneg %p251
        $region82: #{tpu_custom_call.1} parent=79 // pred_check_branch
          %2416 = sbr.rel (%p2414) target = $region84
        $region83: #{tpu_custom_call.1} parent=79 // pred_region
          %s2417 = sand.u32 %s236, 1
          %s2418 = scalar_lea.sflag [#allocation5], %s2417
          %s2419 = sand.u32 %s236, 1
          %s2420 = smul.addr %s2419, 128
          %s2421 = scalar_lea.vmem [#allocation14], %s2420
          %2423 = dma.done %s2418, 2048
        $region84: #{tpu_custom_call.1} parent=79 // pred_fallthru
          _
      $region80: #{tpu_custom_call.1} parent=5 // pred_fallthru
        _
    $region6: #{tpu_custom_call.1} parent=1 // loop_footer
      %s28 = sadd.s32 1, %s24
    $region7: #{tpu_custom_call.1} parent=1 // loop_footer_branch
      %23 = sbr.rel target = $region3
    $region8: #{tpu_custom_call.1} parent=1 // loop_exit
      _
    %2424 = vsyncpa [#allocation4], 1
    %s2425 = scalar_lea.sflag [#allocation4], 1
    %2426 = vsyncpa %s2425, 1
    %2427 = vsyncpa [#allocation7], 1
    %s2428 = scalar_lea.sflag [#allocation7], 1
    %2429 = vsyncpa %s2428, 1
    %2430 = vsyncpa [#allocation10], 1
    %2431 = vsyncpa [#allocation13], 1
    %2432 = vsyncpa [#allocation5], 1
    %s2433 = scalar_lea.sflag [#allocation5], 1
    %2434 = vsyncpa %s2433, 1

</llo_original>
